<compile_context>
chip_gen: v5e
topology: v5e:2x2
jax: 0.10.0
libtpu: 0.0.40
codegen_flags: <defaults>
</compile_context>

<pallas_src>
import math
import functools

import jax
import jax.numpy as jnp
from jax import lax
from jax.experimental import pallas as pl
from jax.experimental.pallas import tpu as pltpu


# ---------------------------------------------------------------------------
# In-kernel helpers
# ---------------------------------------------------------------------------
def _layernorm(x, gamma, beta, eps=1e-5):
    mu = jnp.mean(x, axis=-1, keepdims=True)
    var = jnp.mean((x - mu) ** 2, axis=-1, keepdims=True)
    return (x - mu) * lax.rsqrt(var + eps) * gamma + beta


# ---------------------------------------------------------------------------
# Fused kernel: one batch element per grid step.
# ---------------------------------------------------------------------------
def transformer_block_kernel(x_ref, g1_ref, b1_ref, wqkv_ref, bqkv_ref,
                             wp_ref, bp_ref, g2_ref, b2_ref,
                             w1_ref, b1m_ref, w2_ref, b2m_ref,
                             o_ref, *, n_heads, n_embd, seq_len):
    F, H, L = n_embd, n_heads, seq_len
    HF = H * F
    JB = F // L                                            # row blocks per head

    x = x_ref[0]                                           # (L, F)
    xn = _layernorm(x, g1_ref[...], b1_ref[...])           # (L, F)

    # Fused Q|K|V projection for all heads: one lane-dense matmul (L, F) @ (F, 3*H*F).
    # The 1/sqrt(L) attention scale is already folded into the Q columns (wrapper-side).
    qkv = jnp.dot(xn, wqkv_ref[...], preferred_element_type=jnp.float32) + bqkv_ref[...]

    # Attention + head-merge + output projection, accumulated in registers.
    proj = jnp.zeros((L, F), jnp.float32)
    for h in range(H):                                     # static unroll, H is small
        q = qkv[:, h * F:(h + 1) * F]                      # (L, F)  (Q features pre-permuted)
        k = qkv[:, HF + h * F: HF + (h + 1) * F]           # (L, F)
        v = qkv[:, 2 * HF + h * F: 2 * HF + (h + 1) * F]   # (L, F)

        # att[r, f2] = sum_l q[l, r] * k[l, f2]   (contract over sequence, as in the module)
        att = lax.dot_general(q, k, (((0,), (0,)), ((), ())),
                              preferred_element_type=jnp.float32)          # (F, F)
        att = att - jnp.max(att, axis=-1, keepdims=True)
        e = jnp.exp(att)
        att = e * pl.reciprocal(jnp.sum(e, axis=-1, keepdims=True), approx=True)

        # yp[r, l] = sum_f2 att[r, f2] * v[l, f2]
        yp = lax.dot_general(att, v, (((1,), (1,)), ((), ())),
                             preferred_element_type=jnp.float32)           # (F, L)

        # Head merge (torch's transpose(1,2).contiguous().view(B,L,F*H)) + projection:
        # thanks to the wrapper-side Q-feature and proj-row permutations, output token `a`
        # only needs the contiguous row block yp[j*L:(j+1)*L, :] against matching wp rows.
        for j in range(JB):
            proj += jnp.dot(yp[j * L:(j + 1) * L, :],
                            wp_ref[h * F + j * L: h * F + (j + 1) * L, :],
                            preferred_element_type=jnp.float32)

    x1 = x + proj + bp_ref[...]                            # attention residual

    xn2 = _layernorm(x1, g2_ref[...], b2_ref[...])
    hmid = jnp.maximum(
        jnp.dot(xn2, w1_ref[...], preferred_element_type=jnp.float32) + b1m_ref[...], 0.0)
    o_ref[0] = x1 + jnp.dot(hmid, w2_ref[...], preferred_element_type=jnp.float32) + b2m_ref[...]


# ---------------------------------------------------------------------------
# Wrapper: wrapper-side weight fusion / permutation (free), then one pallas_call.
# ---------------------------------------------------------------------------
def transformer_block(x, params, n_heads):
    (g1, bt1, wq, bq, wk, bk, wv, bv, wp, bp, g2, bt2, w1, b1m, w2, b2m) = params
    B, L, F = x.shape
    H = n_heads
    HF = H * F
    assert F % L == 0, "fused kernel assumes seq_len divides n_embd"
    # TODO(synk): for F % L != 0, fall back to a two-kernel path with the head-merge relayout in XLA.
    JB = F // L
    scale = 1.0 / math.sqrt(float(L))       # torch: 1/sqrt(k.size(-1)) = 1/sqrt(L)

    # torch Linear(F, F*H): out index o = f*H + h after .view(B, L, F, H)
    def split_w(W):     # (F*H, F) -> (H, F_in, F_out)
        return jnp.transpose(W.reshape(F, H, F), (1, 2, 0))

    def split_b(b):     # (F*H,) -> (H, F_out)
        return b.reshape(F, H).T

    # Permute Q features so that torch feature f = a*JB + j lands at position r' = j*L + a.
    rp = jnp.arange(F)
    phi = (rp % L) * JB + (rp // L)

    wq_h = split_w(wq)[:, :, phi] * scale
    bq_h = split_b(bq)[:, phi] * scale
    wk_h, bk_h = split_w(wk), split_b(bk)
    wv_h, bv_h = split_w(wv), split_b(bv)

    def cat_w(w_h):     # (H, F_in, F_out) -> (F_in, H*F_out), column index h*F + f_out
        return jnp.transpose(w_h, (1, 0, 2)).reshape(F, HF)

    wqkv = jnp.concatenate([cat_w(wq_h), cat_w(wk_h), cat_w(wv_h)], axis=1)      # (F, 3*HF)
    bqkv = jnp.concatenate(
        [bq_h.reshape(HF), bk_h.reshape(HF), bv_h.reshape(HF)]).reshape(1, 3 * HF)

    # Projection weight with rows permuted to the kernel's (h, j, l) column order:
    # wp_alt[h*F + j*L + l, :] = Wp[:, (j*H + h)*L + l]
    hh = jnp.arange(H).reshape(H, 1, 1)
    jj = jnp.arange(JB).reshape(1, JB, 1)
    ll = jnp.arange(L).reshape(1, 1, L)
    src = ((jj * H + hh) * L + ll).reshape(HF)
    wp_alt = wp.T[src, :]                                                        # (HF, F)

    g1_2, bt1_2 = g1.reshape(1, F), bt1.reshape(1, F)
    g2_2, bt2_2 = g2.reshape(1, F), bt2.reshape(1, F)
    bp_2 = bp.reshape(1, F)
    w1_t, b1m_2 = w1.T, b1m.reshape(1, 4 * F)
    w2_t, b2m_2 = w2.T, b2m.reshape(1, F)

    def bcast(arr):     # grid-invariant 2-D weight/bias, whole array resident
        return pl.BlockSpec(arr.shape, lambda b: (0, 0))

    kernel = functools.partial(transformer_block_kernel,
                               n_heads=H, n_embd=F, seq_len=L)
    return pl.pallas_call(
        kernel,
        out_shape=jax.ShapeDtypeStruct((B, L, F), jnp.float32),
        grid=(B,),
        in_specs=[
            pl.BlockSpec((1, L, F), lambda b: (b, 0, 0)),
            bcast(g1_2), bcast(bt1_2),
            bcast(wqkv), bcast(bqkv),
            bcast(wp_alt), bcast(bp_2),
            bcast(g2_2), bcast(bt2_2),
            bcast(w1_t), bcast(b1m_2),
            bcast(w2_t), bcast(b2m_2),
        ],
        out_specs=pl.BlockSpec((1, L, F), lambda b: (b, 0, 0)),
        compiler_params=pltpu.CompilerParams(dimension_semantics=("parallel",)),
    )(x, g1_2, bt1_2, wqkv, bqkv, wp_alt, bp_2, g2_2, bt2_2, w1_t, b1m_2, w2_t, b2m_2)


# ---------------------------------------------------------------------------
# Pure-JAX reference (mirrors the PyTorch forward exactly), for a sanity check.
# ---------------------------------------------------------------------------
def reference_block(x, params, n_heads):
    (g1, bt1, wq, bq, wk, bk, wv, bv, wp, bp, g2, bt2, w1, b1m, w2, b2m) = params
    B, L, F = x.shape
    H = n_heads

    def ln(z, g, b):
        mu = z.mean(-1, keepdims=True)
        var = ((z - mu) ** 2).mean(-1, keepdims=True)
        return (z - mu) / jnp.sqrt(var + 1e-5) * g + b

    def lin(z, W, b):
        return jnp.dot(z, W.T, precision=lax.Precision.HIGHEST) + b

    xn = ln(x, g1, bt1)
    k = lin(xn, wk, bk).reshape(B, L, F, H).transpose(0, 3, 2, 1)   # (B,H,F,L)
    q = lin(xn, wq, bq).reshape(B, L, F, H).transpose(0, 3, 2, 1)
    v = lin(xn, wv, bv).reshape(B, L, F, H).transpose(0, 3, 2, 1)
    att = jnp.einsum('bhfl,bhgl->bhfg', q, k,
                     precision=lax.Precision.HIGHEST) * (1.0 / math.sqrt(L))
    att = jax.nn.softmax(att, axis=-1)
    y = jnp.einsum('bhfg,bhgl->bhfl', att, v, precision=lax.Precision.HIGHEST)
    y = y.transpose(0, 2, 1, 3).reshape(B, L, F * H)
    x1 = x + lin(y, wp, bp)
    h1 = jnp.maximum(lin(ln(x1, g2, bt2), w1, b1m), 0.0)
    return x1 + lin(h1, w2, b2m)


# ---------------------------------------------------------------------------
# Main
# ---------------------------------------------------------------------------
def init_params(key, n_embd, n_heads):
    F, H = n_embd, n_heads
    ks = jax.random.split(key, 12)
    u = lambda k, shape, fan_in: jax.random.uniform(
        k, shape, jnp.float32, -1.0 / math.sqrt(fan_in), 1.0 / math.sqrt(fan_in))
    g1, bt1 = jnp.ones((F,), jnp.float32), jnp.zeros((F,), jnp.float32)
    g2, bt2 = jnp.ones((F,), jnp.float32), jnp.zeros((F,), jnp.float32)
    wq, bq = u(ks[0], (F * H, F), F), u(ks[1], (F * H,), F)
    wk, bk = u(ks[2], (F * H, F), F), u(ks[3], (F * H,), F)
    wv, bv = u(ks[4], (F * H, F), F), u(ks[5], (F * H,), F)
    wp, bp = u(ks[6], (F, F * H), F * H), u(ks[7], (F,), F * H)
    w1, b1m = u(ks[8], (4 * F, F), F), u(ks[9], (4 * F,), F)
    w2, b2m = u(ks[10], (F, 4 * F), 4 * F), u(ks[11], (F,), 4 * F)
    return (g1, bt1, wq, bq, wk, bk, wv, bv, wp, bp, g2, bt2, w1, b1m, w2, b2m)


if __name__ == "__main__":
    B, L, n_embd, n_heads = 2, 8, 32, 4
    key = jax.random.PRNGKey(0)
    kx, kp = jax.random.split(key)
    x = jax.random.normal(kx, (B, L, n_embd), jnp.float32)
    params = init_params(kp, n_embd, n_heads)

    out = transformer_block(x, params, n_heads)
    out = jax.block_until_ready(out)

    ref = reference_block(x, params, n_heads)
    assert out.shape == (B, L, n_embd)
    assert jnp.allclose(out, ref, atol=2e-3, rtol=2e-3), (
        f"max abs err {jnp.max(jnp.abs(out - ref))}")
    print("KERNEL_OK")
</pallas_src>

<mosaic_0001>
module attributes {stable_mosaic.version = 11 : i64} {
  func.func @transformer_block_kernel(%arg0: i32, %arg1: memref<1x8x32xf32, #tpu.memory_space<vmem>>, %arg2: memref<1x32xf32, #tpu.memory_space<vmem>>, %arg3: memref<1x32xf32, #tpu.memory_space<vmem>>, %arg4: memref<32x384xf32, #tpu.memory_space<vmem>>, %arg5: memref<1x384xf32, #tpu.memory_space<vmem>>, %arg6: memref<128x32xf32, #tpu.memory_space<vmem>>, %arg7: memref<1x32xf32, #tpu.memory_space<vmem>>, %arg8: memref<1x32xf32, #tpu.memory_space<vmem>>, %arg9: memref<1x32xf32, #tpu.memory_space<vmem>>, %arg10: memref<32x128xf32, #tpu.memory_space<vmem>>, %arg11: memref<1x128xf32, #tpu.memory_space<vmem>>, %arg12: memref<128x32xf32, #tpu.memory_space<vmem>>, %arg13: memref<1x32xf32, #tpu.memory_space<vmem>>, %arg14: memref<1x8x32xf32, #tpu.memory_space<vmem>>) attributes {dimension_semantics = [#tpu.dimension_semantics<parallel>], iteration_bounds = array<i64: 2>, scalar_prefetch = 0 : i64, scratch_operands = 0 : i64, tpu.core_type = #tpu.core_type<tc>, window_params = [{transform_indices = @transform_0, window_bounds = array<i64: 1, 8, 32>}, {pipeline_mode = #tpu.pipeline_mode<synchronous>, transform_indices = @transform_1, window_bounds = array<i64: 1, 32>}, {pipeline_mode = #tpu.pipeline_mode<synchronous>, transform_indices = @transform_2, window_bounds = array<i64: 1, 32>}, {pipeline_mode = #tpu.pipeline_mode<synchronous>, transform_indices = @transform_3, window_bounds = array<i64: 32, 384>}, {pipeline_mode = #tpu.pipeline_mode<synchronous>, transform_indices = @transform_4, window_bounds = array<i64: 1, 384>}, {pipeline_mode = #tpu.pipeline_mode<synchronous>, transform_indices = @transform_5, window_bounds = array<i64: 128, 32>}, {pipeline_mode = #tpu.pipeline_mode<synchronous>, transform_indices = @transform_6, window_bounds = array<i64: 1, 32>}, {pipeline_mode = #tpu.pipeline_mode<synchronous>, transform_indices = @transform_7, window_bounds = array<i64: 1, 32>}, {pipeline_mode = #tpu.pipeline_mode<synchronous>, transform_indices = @transform_8, window_bounds = array<i64: 1, 32>}, {pipeline_mode = #tpu.pipeline_mode<synchronous>, transform_indices = @transform_9, window_bounds = array<i64: 32, 128>}, {pipeline_mode = #tpu.pipeline_mode<synchronous>, transform_indices = @transform_10, window_bounds = array<i64: 1, 128>}, {pipeline_mode = #tpu.pipeline_mode<synchronous>, transform_indices = @transform_11, window_bounds = array<i64: 128, 32>}, {pipeline_mode = #tpu.pipeline_mode<synchronous>, transform_indices = @transform_12, window_bounds = array<i64: 1, 32>}, {transform_indices = @transform_13, window_bounds = array<i64: 1, 8, 32>}]} {
    %c0 = arith.constant 0 : index
    %c0_0 = arith.constant 0 : index
    %c0_1 = arith.constant 0 : index
    %0 = vector.load %arg1[%c0, %c0_0, %c0_1] : memref<1x8x32xf32, #tpu.memory_space<vmem>>, vector<1x8x32xf32>
    %1 = vector.shape_cast %0 : vector<1x8x32xf32> to vector<8x32xf32>
    %c0_2 = arith.constant 0 : index
    %c0_3 = arith.constant 0 : index
    %2 = vector.load %arg2[%c0_2, %c0_3] : memref<1x32xf32, #tpu.memory_space<vmem>>, vector<1x32xf32>
    %c0_4 = arith.constant 0 : index
    %c0_5 = arith.constant 0 : index
    %3 = vector.load %arg3[%c0_4, %c0_5] : memref<1x32xf32, #tpu.memory_space<vmem>>, vector<1x32xf32>
    %cst = arith.constant dense<0.000000e+00> : vector<8xf32>
    %4 = vector.multi_reduction <add>, %1, %cst [1] : vector<8x32xf32> to vector<8xf32>
    %5 = vector.shape_cast %4 : vector<8xf32> to vector<8x1xf32>
    %cst_6 = arith.constant 3.200000e+01 : f32
    %6 = vector.broadcast %cst_6 : f32 to vector<8x1xf32>
    %7 = arith.divf %5, %6 : vector<8x1xf32>
    %8 = vector.broadcast %7 : vector<8x1xf32> to vector<8x32xf32>
    %9 = arith.subf %1, %8 : vector<8x32xf32>
    %10 = arith.mulf %9, %9 : vector<8x32xf32>
    %cst_7 = arith.constant dense<0.000000e+00> : vector<8xf32>
    %11 = vector.multi_reduction <add>, %10, %cst_7 [1] : vector<8x32xf32> to vector<8xf32>
    %12 = vector.shape_cast %11 : vector<8xf32> to vector<8x1xf32>
    %cst_8 = arith.constant 3.200000e+01 : f32
    %13 = vector.broadcast %cst_8 : f32 to vector<8x1xf32>
    %14 = arith.divf %12, %13 : vector<8x1xf32>
    %15 = vector.broadcast %7 : vector<8x1xf32> to vector<8x32xf32>
    %16 = arith.subf %1, %15 : vector<8x32xf32>
    %cst_9 = arith.constant 9.99999974E-6 : f32
    %17 = vector.broadcast %cst_9 : f32 to vector<8x1xf32>
    %18 = arith.addf %14, %17 : vector<8x1xf32>
    %19 = math.rsqrt %18 : vector<8x1xf32>
    %20 = vector.broadcast %19 : vector<8x1xf32> to vector<8x32xf32>
    %21 = arith.mulf %16, %20 : vector<8x32xf32>
    %22 = vector.broadcast %2 : vector<1x32xf32> to vector<8x32xf32>
    %23 = arith.mulf %21, %22 : vector<8x32xf32>
    %24 = vector.broadcast %3 : vector<1x32xf32> to vector<8x32xf32>
    %25 = arith.addf %23, %24 : vector<8x32xf32>
    %c0_10 = arith.constant 0 : index
    %c0_11 = arith.constant 0 : index
    %26 = vector.load %arg4[%c0_10, %c0_11] : memref<32x384xf32, #tpu.memory_space<vmem>>, vector<32x384xf32>
    %cst_12 = arith.constant dense<0.000000e+00> : vector<8x384xf32>
    %27 = tpu.matmul %25, %26, %cst_12 {dimension_numbers = #tpu.dot_dimension_numbers<[1], [0], [0], [1], [0, 0, 1, 1], [], []>} : vector<8x32xf32>, vector<32x384xf32>, vector<8x384xf32> -> vector<8x384xf32>
    %c0_13 = arith.constant 0 : index
    %c0_14 = arith.constant 0 : index
    %28 = vector.load %arg5[%c0_13, %c0_14] : memref<1x384xf32, #tpu.memory_space<vmem>>, vector<1x384xf32>
    %29 = vector.broadcast %28 : vector<1x384xf32> to vector<8x384xf32>
    %30 = arith.addf %27, %29 : vector<8x384xf32>
    %cst_15 = arith.constant 0.000000e+00 : f32
    %31 = vector.broadcast %cst_15 : f32 to vector<8x32xf32>
    %32 = vector.extract_strided_slice %30 {offsets = [0, 0], sizes = [8, 32], strides = [1, 1]} : vector<8x384xf32> to vector<8x32xf32>
    %33 = vector.extract_strided_slice %30 {offsets = [0, 128], sizes = [8, 32], strides = [1, 1]} : vector<8x384xf32> to vector<8x32xf32>
    %34 = vector.extract_strided_slice %30 {offsets = [0, 256], sizes = [8, 32], strides = [1, 1]} : vector<8x384xf32> to vector<8x32xf32>
    %cst_16 = arith.constant dense<0.000000e+00> : vector<32x32xf32>
    %35 = tpu.matmul %32, %33, %cst_16 {dimension_numbers = #tpu.dot_dimension_numbers<[0], [0], [1], [1], [0, 1, 1, 1], [], []>} : vector<8x32xf32>, vector<8x32xf32>, vector<32x32xf32> -> vector<32x32xf32>
    %cst_17 = arith.constant dense<0xFF800000> : vector<32xf32>
    %36 = vector.multi_reduction <maximumf>, %35, %cst_17 [1] : vector<32x32xf32> to vector<32xf32>
    %37 = vector.shape_cast %36 : vector<32xf32> to vector<32x1xf32>
    %38 = vector.broadcast %37 : vector<32x1xf32> to vector<32x32xf32>
    %39 = arith.subf %35, %38 : vector<32x32xf32>
    %40 = math.exp %39 : vector<32x32xf32>
    %cst_18 = arith.constant dense<0.000000e+00> : vector<32xf32>
    %41 = vector.multi_reduction <add>, %40, %cst_18 [1] : vector<32x32xf32> to vector<32xf32>
    %42 = vector.shape_cast %41 : vector<32xf32> to vector<32x1xf32>
    %43 = tpu.reciprocal %42 {approx = true} : vector<32x1xf32> -> vector<32x1xf32>
    %44 = vector.broadcast %43 : vector<32x1xf32> to vector<32x32xf32>
    %45 = arith.mulf %40, %44 : vector<32x32xf32>
    %cst_19 = arith.constant dense<0.000000e+00> : vector<32x8xf32>
    %46 = tpu.matmul %45, %34, %cst_19 {dimension_numbers = #tpu.dot_dimension_numbers<[1], [1], [0], [0], [0, 0, 1, 0], [], []>} : vector<32x32xf32>, vector<8x32xf32>, vector<32x8xf32> -> vector<32x8xf32>
    %47 = vector.extract_strided_slice %46 {offsets = [0, 0], sizes = [8, 8], strides = [1, 1]} : vector<32x8xf32> to vector<8x8xf32>
    %c0_20 = arith.constant 0 : index
    %c0_21 = arith.constant 0 : index
    %48 = vector.load %arg6[%c0_20, %c0_21] : memref<128x32xf32, #tpu.memory_space<vmem>>, vector<8x32xf32>
    %cst_22 = arith.constant dense<0.000000e+00> : vector<8x32xf32>
    %49 = tpu.matmul %47, %48, %cst_22 {dimension_numbers = #tpu.dot_dimension_numbers<[1], [0], [0], [1], [0, 0, 1, 1], [], []>} : vector<8x8xf32>, vector<8x32xf32>, vector<8x32xf32> -> vector<8x32xf32>
    %50 = arith.addf %31, %49 : vector<8x32xf32>
    %51 = vector.extract_strided_slice %46 {offsets = [8, 0], sizes = [8, 8], strides = [1, 1]} : vector<32x8xf32> to vector<8x8xf32>
    %c8 = arith.constant 8 : index
    %c0_23 = arith.constant 0 : index
    %52 = vector.load %arg6[%c8, %c0_23] : memref<128x32xf32, #tpu.memory_space<vmem>>, vector<8x32xf32>
    %cst_24 = arith.constant dense<0.000000e+00> : vector<8x32xf32>
    %53 = tpu.matmul %51, %52, %cst_24 {dimension_numbers = #tpu.dot_dimension_numbers<[1], [0], [0], [1], [0, 0, 1, 1], [], []>} : vector<8x8xf32>, vector<8x32xf32>, vector<8x32xf32> -> vector<8x32xf32>
    %54 = arith.addf %50, %53 : vector<8x32xf32>
    %55 = vector.extract_strided_slice %46 {offsets = [16, 0], sizes = [8, 8], strides = [1, 1]} : vector<32x8xf32> to vector<8x8xf32>
    %c16 = arith.constant 16 : index
    %c0_25 = arith.constant 0 : index
    %56 = vector.load %arg6[%c16, %c0_25] : memref<128x32xf32, #tpu.memory_space<vmem>>, vector<8x32xf32>
    %cst_26 = arith.constant dense<0.000000e+00> : vector<8x32xf32>
    %57 = tpu.matmul %55, %56, %cst_26 {dimension_numbers = #tpu.dot_dimension_numbers<[1], [0], [0], [1], [0, 0, 1, 1], [], []>} : vector<8x8xf32>, vector<8x32xf32>, vector<8x32xf32> -> vector<8x32xf32>
    %58 = arith.addf %54, %57 : vector<8x32xf32>
    %59 = vector.extract_strided_slice %46 {offsets = [24, 0], sizes = [8, 8], strides = [1, 1]} : vector<32x8xf32> to vector<8x8xf32>
    %c24 = arith.constant 24 : index
    %c0_27 = arith.constant 0 : index
    %60 = vector.load %arg6[%c24, %c0_27] : memref<128x32xf32, #tpu.memory_space<vmem>>, vector<8x32xf32>
    %cst_28 = arith.constant dense<0.000000e+00> : vector<8x32xf32>
    %61 = tpu.matmul %59, %60, %cst_28 {dimension_numbers = #tpu.dot_dimension_numbers<[1], [0], [0], [1], [0, 0, 1, 1], [], []>} : vector<8x8xf32>, vector<8x32xf32>, vector<8x32xf32> -> vector<8x32xf32>
    %62 = arith.addf %58, %61 : vector<8x32xf32>
    %63 = vector.extract_strided_slice %30 {offsets = [0, 32], sizes = [8, 32], strides = [1, 1]} : vector<8x384xf32> to vector<8x32xf32>
    %64 = vector.extract_strided_slice %30 {offsets = [0, 160], sizes = [8, 32], strides = [1, 1]} : vector<8x384xf32> to vector<8x32xf32>
    %65 = vector.extract_strided_slice %30 {offsets = [0, 288], sizes = [8, 32], strides = [1, 1]} : vector<8x384xf32> to vector<8x32xf32>
    %cst_29 = arith.constant dense<0.000000e+00> : vector<32x32xf32>
    %66 = tpu.matmul %63, %64, %cst_29 {dimension_numbers = #tpu.dot_dimension_numbers<[0], [0], [1], [1], [0, 1, 1, 1], [], []>} : vector<8x32xf32>, vector<8x32xf32>, vector<32x32xf32> -> vector<32x32xf32>
    %cst_30 = arith.constant dense<0xFF800000> : vector<32xf32>
    %67 = vector.multi_reduction <maximumf>, %66, %cst_30 [1] : vector<32x32xf32> to vector<32xf32>
    %68 = vector.shape_cast %67 : vector<32xf32> to vector<32x1xf32>
    %69 = vector.broadcast %68 : vector<32x1xf32> to vector<32x32xf32>
    %70 = arith.subf %66, %69 : vector<32x32xf32>
    %71 = math.exp %70 : vector<32x32xf32>
    %cst_31 = arith.constant dense<0.000000e+00> : vector<32xf32>
    %72 = vector.multi_reduction <add>, %71, %cst_31 [1] : vector<32x32xf32> to vector<32xf32>
    %73 = vector.shape_cast %72 : vector<32xf32> to vector<32x1xf32>
    %74 = tpu.reciprocal %73 {approx = true} : vector<32x1xf32> -> vector<32x1xf32>
    %75 = vector.broadcast %74 : vector<32x1xf32> to vector<32x32xf32>
    %76 = arith.mulf %71, %75 : vector<32x32xf32>
    %cst_32 = arith.constant dense<0.000000e+00> : vector<32x8xf32>
    %77 = tpu.matmul %76, %65, %cst_32 {dimension_numbers = #tpu.dot_dimension_numbers<[1], [1], [0], [0], [0, 0, 1, 0], [], []>} : vector<32x32xf32>, vector<8x32xf32>, vector<32x8xf32> -> vector<32x8xf32>
    %78 = vector.extract_strided_slice %77 {offsets = [0, 0], sizes = [8, 8], strides = [1, 1]} : vector<32x8xf32> to vector<8x8xf32>
    %c32 = arith.constant 32 : index
    %c0_33 = arith.constant 0 : index
    %79 = vector.load %arg6[%c32, %c0_33] : memref<128x32xf32, #tpu.memory_space<vmem>>, vector<8x32xf32>
    %cst_34 = arith.constant dense<0.000000e+00> : vector<8x32xf32>
    %80 = tpu.matmul %78, %79, %cst_34 {dimension_numbers = #tpu.dot_dimension_numbers<[1], [0], [0], [1], [0, 0, 1, 1], [], []>} : vector<8x8xf32>, vector<8x32xf32>, vector<8x32xf32> -> vector<8x32xf32>
    %81 = arith.addf %62, %80 : vector<8x32xf32>
    %82 = vector.extract_strided_slice %77 {offsets = [8, 0], sizes = [8, 8], strides = [1, 1]} : vector<32x8xf32> to vector<8x8xf32>
    %c40 = arith.constant 40 : index
    %c0_35 = arith.constant 0 : index
    %83 = vector.load %arg6[%c40, %c0_35] : memref<128x32xf32, #tpu.memory_space<vmem>>, vector<8x32xf32>
    %cst_36 = arith.constant dense<0.000000e+00> : vector<8x32xf32>
    %84 = tpu.matmul %82, %83, %cst_36 {dimension_numbers = #tpu.dot_dimension_numbers<[1], [0], [0], [1], [0, 0, 1, 1], [], []>} : vector<8x8xf32>, vector<8x32xf32>, vector<8x32xf32> -> vector<8x32xf32>
    %85 = arith.addf %81, %84 : vector<8x32xf32>
    %86 = vector.extract_strided_slice %77 {offsets = [16, 0], sizes = [8, 8], strides = [1, 1]} : vector<32x8xf32> to vector<8x8xf32>
    %c48 = arith.constant 48 : index
    %c0_37 = arith.constant 0 : index
    %87 = vector.load %arg6[%c48, %c0_37] : memref<128x32xf32, #tpu.memory_space<vmem>>, vector<8x32xf32>
    %cst_38 = arith.constant dense<0.000000e+00> : vector<8x32xf32>
    %88 = tpu.matmul %86, %87, %cst_38 {dimension_numbers = #tpu.dot_dimension_numbers<[1], [0], [0], [1], [0, 0, 1, 1], [], []>} : vector<8x8xf32>, vector<8x32xf32>, vector<8x32xf32> -> vector<8x32xf32>
    %89 = arith.addf %85, %88 : vector<8x32xf32>
    %90 = vector.extract_strided_slice %77 {offsets = [24, 0], sizes = [8, 8], strides = [1, 1]} : vector<32x8xf32> to vector<8x8xf32>
    %c56 = arith.constant 56 : index
    %c0_39 = arith.constant 0 : index
    %91 = vector.load %arg6[%c56, %c0_39] : memref<128x32xf32, #tpu.memory_space<vmem>>, vector<8x32xf32>
    %cst_40 = arith.constant dense<0.000000e+00> : vector<8x32xf32>
    %92 = tpu.matmul %90, %91, %cst_40 {dimension_numbers = #tpu.dot_dimension_numbers<[1], [0], [0], [1], [0, 0, 1, 1], [], []>} : vector<8x8xf32>, vector<8x32xf32>, vector<8x32xf32> -> vector<8x32xf32>
    %93 = arith.addf %89, %92 : vector<8x32xf32>
    %94 = vector.extract_strided_slice %30 {offsets = [0, 64], sizes = [8, 32], strides = [1, 1]} : vector<8x384xf32> to vector<8x32xf32>
    %95 = vector.extract_strided_slice %30 {offsets = [0, 192], sizes = [8, 32], strides = [1, 1]} : vector<8x384xf32> to vector<8x32xf32>
    %96 = vector.extract_strided_slice %30 {offsets = [0, 320], sizes = [8, 32], strides = [1, 1]} : vector<8x384xf32> to vector<8x32xf32>
    %cst_41 = arith.constant dense<0.000000e+00> : vector<32x32xf32>
    %97 = tpu.matmul %94, %95, %cst_41 {dimension_numbers = #tpu.dot_dimension_numbers<[0], [0], [1], [1], [0, 1, 1, 1], [], []>} : vector<8x32xf32>, vector<8x32xf32>, vector<32x32xf32> -> vector<32x32xf32>
    %cst_42 = arith.constant dense<0xFF800000> : vector<32xf32>
    %98 = vector.multi_reduction <maximumf>, %97, %cst_42 [1] : vector<32x32xf32> to vector<32xf32>
    %99 = vector.shape_cast %98 : vector<32xf32> to vector<32x1xf32>
    %100 = vector.broadcast %99 : vector<32x1xf32> to vector<32x32xf32>
    %101 = arith.subf %97, %100 : vector<32x32xf32>
    %102 = math.exp %101 : vector<32x32xf32>
    %cst_43 = arith.constant dense<0.000000e+00> : vector<32xf32>
    %103 = vector.multi_reduction <add>, %102, %cst_43 [1] : vector<32x32xf32> to vector<32xf32>
    %104 = vector.shape_cast %103 : vector<32xf32> to vector<32x1xf32>
    %105 = tpu.reciprocal %104 {approx = true} : vector<32x1xf32> -> vector<32x1xf32>
    %106 = vector.broadcast %105 : vector<32x1xf32> to vector<32x32xf32>
    %107 = arith.mulf %102, %106 : vector<32x32xf32>
    %cst_44 = arith.constant dense<0.000000e+00> : vector<32x8xf32>
    %108 = tpu.matmul %107, %96, %cst_44 {dimension_numbers = #tpu.dot_dimension_numbers<[1], [1], [0], [0], [0, 0, 1, 0], [], []>} : vector<32x32xf32>, vector<8x32xf32>, vector<32x8xf32> -> vector<32x8xf32>
    %109 = vector.extract_strided_slice %108 {offsets = [0, 0], sizes = [8, 8], strides = [1, 1]} : vector<32x8xf32> to vector<8x8xf32>
    %c64 = arith.constant 64 : index
    %c0_45 = arith.constant 0 : index
    %110 = vector.load %arg6[%c64, %c0_45] : memref<128x32xf32, #tpu.memory_space<vmem>>, vector<8x32xf32>
    %cst_46 = arith.constant dense<0.000000e+00> : vector<8x32xf32>
    %111 = tpu.matmul %109, %110, %cst_46 {dimension_numbers = #tpu.dot_dimension_numbers<[1], [0], [0], [1], [0, 0, 1, 1], [], []>} : vector<8x8xf32>, vector<8x32xf32>, vector<8x32xf32> -> vector<8x32xf32>
    %112 = arith.addf %93, %111 : vector<8x32xf32>
    %113 = vector.extract_strided_slice %108 {offsets = [8, 0], sizes = [8, 8], strides = [1, 1]} : vector<32x8xf32> to vector<8x8xf32>
    %c72 = arith.constant 72 : index
    %c0_47 = arith.constant 0 : index
    %114 = vector.load %arg6[%c72, %c0_47] : memref<128x32xf32, #tpu.memory_space<vmem>>, vector<8x32xf32>
    %cst_48 = arith.constant dense<0.000000e+00> : vector<8x32xf32>
    %115 = tpu.matmul %113, %114, %cst_48 {dimension_numbers = #tpu.dot_dimension_numbers<[1], [0], [0], [1], [0, 0, 1, 1], [], []>} : vector<8x8xf32>, vector<8x32xf32>, vector<8x32xf32> -> vector<8x32xf32>
    %116 = arith.addf %112, %115 : vector<8x32xf32>
    %117 = vector.extract_strided_slice %108 {offsets = [16, 0], sizes = [8, 8], strides = [1, 1]} : vector<32x8xf32> to vector<8x8xf32>
    %c80 = arith.constant 80 : index
    %c0_49 = arith.constant 0 : index
    %118 = vector.load %arg6[%c80, %c0_49] : memref<128x32xf32, #tpu.memory_space<vmem>>, vector<8x32xf32>
    %cst_50 = arith.constant dense<0.000000e+00> : vector<8x32xf32>
    %119 = tpu.matmul %117, %118, %cst_50 {dimension_numbers = #tpu.dot_dimension_numbers<[1], [0], [0], [1], [0, 0, 1, 1], [], []>} : vector<8x8xf32>, vector<8x32xf32>, vector<8x32xf32> -> vector<8x32xf32>
    %120 = arith.addf %116, %119 : vector<8x32xf32>
    %121 = vector.extract_strided_slice %108 {offsets = [24, 0], sizes = [8, 8], strides = [1, 1]} : vector<32x8xf32> to vector<8x8xf32>
    %c88 = arith.constant 88 : index
    %c0_51 = arith.constant 0 : index
    %122 = vector.load %arg6[%c88, %c0_51] : memref<128x32xf32, #tpu.memory_space<vmem>>, vector<8x32xf32>
    %cst_52 = arith.constant dense<0.000000e+00> : vector<8x32xf32>
    %123 = tpu.matmul %121, %122, %cst_52 {dimension_numbers = #tpu.dot_dimension_numbers<[1], [0], [0], [1], [0, 0, 1, 1], [], []>} : vector<8x8xf32>, vector<8x32xf32>, vector<8x32xf32> -> vector<8x32xf32>
    %124 = arith.addf %120, %123 : vector<8x32xf32>
    %125 = vector.extract_strided_slice %30 {offsets = [0, 96], sizes = [8, 32], strides = [1, 1]} : vector<8x384xf32> to vector<8x32xf32>
    %126 = vector.extract_strided_slice %30 {offsets = [0, 224], sizes = [8, 32], strides = [1, 1]} : vector<8x384xf32> to vector<8x32xf32>
    %127 = vector.extract_strided_slice %30 {offsets = [0, 352], sizes = [8, 32], strides = [1, 1]} : vector<8x384xf32> to vector<8x32xf32>
    %cst_53 = arith.constant dense<0.000000e+00> : vector<32x32xf32>
    %128 = tpu.matmul %125, %126, %cst_53 {dimension_numbers = #tpu.dot_dimension_numbers<[0], [0], [1], [1], [0, 1, 1, 1], [], []>} : vector<8x32xf32>, vector<8x32xf32>, vector<32x32xf32> -> vector<32x32xf32>
    %cst_54 = arith.constant dense<0xFF800000> : vector<32xf32>
    %129 = vector.multi_reduction <maximumf>, %128, %cst_54 [1] : vector<32x32xf32> to vector<32xf32>
    %130 = vector.shape_cast %129 : vector<32xf32> to vector<32x1xf32>
    %131 = vector.broadcast %130 : vector<32x1xf32> to vector<32x32xf32>
    %132 = arith.subf %128, %131 : vector<32x32xf32>
    %133 = math.exp %132 : vector<32x32xf32>
    %cst_55 = arith.constant dense<0.000000e+00> : vector<32xf32>
    %134 = vector.multi_reduction <add>, %133, %cst_55 [1] : vector<32x32xf32> to vector<32xf32>
    %135 = vector.shape_cast %134 : vector<32xf32> to vector<32x1xf32>
    %136 = tpu.reciprocal %135 {approx = true} : vector<32x1xf32> -> vector<32x1xf32>
    %137 = vector.broadcast %136 : vector<32x1xf32> to vector<32x32xf32>
    %138 = arith.mulf %133, %137 : vector<32x32xf32>
    %cst_56 = arith.constant dense<0.000000e+00> : vector<32x8xf32>
    %139 = tpu.matmul %138, %127, %cst_56 {dimension_numbers = #tpu.dot_dimension_numbers<[1], [1], [0], [0], [0, 0, 1, 0], [], []>} : vector<32x32xf32>, vector<8x32xf32>, vector<32x8xf32> -> vector<32x8xf32>
    %140 = vector.extract_strided_slice %139 {offsets = [0, 0], sizes = [8, 8], strides = [1, 1]} : vector<32x8xf32> to vector<8x8xf32>
    %c96 = arith.constant 96 : index
    %c0_57 = arith.constant 0 : index
    %141 = vector.load %arg6[%c96, %c0_57] : memref<128x32xf32, #tpu.memory_space<vmem>>, vector<8x32xf32>
    %cst_58 = arith.constant dense<0.000000e+00> : vector<8x32xf32>
    %142 = tpu.matmul %140, %141, %cst_58 {dimension_numbers = #tpu.dot_dimension_numbers<[1], [0], [0], [1], [0, 0, 1, 1], [], []>} : vector<8x8xf32>, vector<8x32xf32>, vector<8x32xf32> -> vector<8x32xf32>
    %143 = arith.addf %124, %142 : vector<8x32xf32>
    %144 = vector.extract_strided_slice %139 {offsets = [8, 0], sizes = [8, 8], strides = [1, 1]} : vector<32x8xf32> to vector<8x8xf32>
    %c104 = arith.constant 104 : index
    %c0_59 = arith.constant 0 : index
    %145 = vector.load %arg6[%c104, %c0_59] : memref<128x32xf32, #tpu.memory_space<vmem>>, vector<8x32xf32>
    %cst_60 = arith.constant dense<0.000000e+00> : vector<8x32xf32>
    %146 = tpu.matmul %144, %145, %cst_60 {dimension_numbers = #tpu.dot_dimension_numbers<[1], [0], [0], [1], [0, 0, 1, 1], [], []>} : vector<8x8xf32>, vector<8x32xf32>, vector<8x32xf32> -> vector<8x32xf32>
    %147 = arith.addf %143, %146 : vector<8x32xf32>
    %148 = vector.extract_strided_slice %139 {offsets = [16, 0], sizes = [8, 8], strides = [1, 1]} : vector<32x8xf32> to vector<8x8xf32>
    %c112 = arith.constant 112 : index
    %c0_61 = arith.constant 0 : index
    %149 = vector.load %arg6[%c112, %c0_61] : memref<128x32xf32, #tpu.memory_space<vmem>>, vector<8x32xf32>
    %cst_62 = arith.constant dense<0.000000e+00> : vector<8x32xf32>
    %150 = tpu.matmul %148, %149, %cst_62 {dimension_numbers = #tpu.dot_dimension_numbers<[1], [0], [0], [1], [0, 0, 1, 1], [], []>} : vector<8x8xf32>, vector<8x32xf32>, vector<8x32xf32> -> vector<8x32xf32>
    %151 = arith.addf %147, %150 : vector<8x32xf32>
    %152 = vector.extract_strided_slice %139 {offsets = [24, 0], sizes = [8, 8], strides = [1, 1]} : vector<32x8xf32> to vector<8x8xf32>
    %c120 = arith.constant 120 : index
    %c0_63 = arith.constant 0 : index
    %153 = vector.load %arg6[%c120, %c0_63] : memref<128x32xf32, #tpu.memory_space<vmem>>, vector<8x32xf32>
    %cst_64 = arith.constant dense<0.000000e+00> : vector<8x32xf32>
    %154 = tpu.matmul %152, %153, %cst_64 {dimension_numbers = #tpu.dot_dimension_numbers<[1], [0], [0], [1], [0, 0, 1, 1], [], []>} : vector<8x8xf32>, vector<8x32xf32>, vector<8x32xf32> -> vector<8x32xf32>
    %155 = arith.addf %151, %154 : vector<8x32xf32>
    %156 = arith.addf %1, %155 : vector<8x32xf32>
    %c0_65 = arith.constant 0 : index
    %c0_66 = arith.constant 0 : index
    %157 = vector.load %arg7[%c0_65, %c0_66] : memref<1x32xf32, #tpu.memory_space<vmem>>, vector<1x32xf32>
    %158 = vector.broadcast %157 : vector<1x32xf32> to vector<8x32xf32>
    %159 = arith.addf %156, %158 : vector<8x32xf32>
    %c0_67 = arith.constant 0 : index
    %c0_68 = arith.constant 0 : index
    %160 = vector.load %arg8[%c0_67, %c0_68] : memref<1x32xf32, #tpu.memory_space<vmem>>, vector<1x32xf32>
    %c0_69 = arith.constant 0 : index
    %c0_70 = arith.constant 0 : index
    %161 = vector.load %arg9[%c0_69, %c0_70] : memref<1x32xf32, #tpu.memory_space<vmem>>, vector<1x32xf32>
    %cst_71 = arith.constant dense<0.000000e+00> : vector<8xf32>
    %162 = vector.multi_reduction <add>, %159, %cst_71 [1] : vector<8x32xf32> to vector<8xf32>
    %163 = vector.shape_cast %162 : vector<8xf32> to vector<8x1xf32>
    %cst_72 = arith.constant 3.200000e+01 : f32
    %164 = vector.broadcast %cst_72 : f32 to vector<8x1xf32>
    %165 = arith.divf %163, %164 : vector<8x1xf32>
    %166 = vector.broadcast %165 : vector<8x1xf32> to vector<8x32xf32>
    %167 = arith.subf %159, %166 : vector<8x32xf32>
    %168 = arith.mulf %167, %167 : vector<8x32xf32>
    %cst_73 = arith.constant dense<0.000000e+00> : vector<8xf32>
    %169 = vector.multi_reduction <add>, %168, %cst_73 [1] : vector<8x32xf32> to vector<8xf32>
    %170 = vector.shape_cast %169 : vector<8xf32> to vector<8x1xf32>
    %cst_74 = arith.constant 3.200000e+01 : f32
    %171 = vector.broadcast %cst_74 : f32 to vector<8x1xf32>
    %172 = arith.divf %170, %171 : vector<8x1xf32>
    %173 = vector.broadcast %165 : vector<8x1xf32> to vector<8x32xf32>
    %174 = arith.subf %159, %173 : vector<8x32xf32>
    %cst_75 = arith.constant 9.99999974E-6 : f32
    %175 = vector.broadcast %cst_75 : f32 to vector<8x1xf32>
    %176 = arith.addf %172, %175 : vector<8x1xf32>
    %177 = math.rsqrt %176 : vector<8x1xf32>
    %178 = vector.broadcast %177 : vector<8x1xf32> to vector<8x32xf32>
    %179 = arith.mulf %174, %178 : vector<8x32xf32>
    %180 = vector.broadcast %160 : vector<1x32xf32> to vector<8x32xf32>
    %181 = arith.mulf %179, %180 : vector<8x32xf32>
    %182 = vector.broadcast %161 : vector<1x32xf32> to vector<8x32xf32>
    %183 = arith.addf %181, %182 : vector<8x32xf32>
    %c0_76 = arith.constant 0 : index
    %c0_77 = arith.constant 0 : index
    %184 = vector.load %arg10[%c0_76, %c0_77] : memref<32x128xf32, #tpu.memory_space<vmem>>, vector<32x128xf32>
    %cst_78 = arith.constant dense<0.000000e+00> : vector<8x128xf32>
    %185 = tpu.matmul %183, %184, %cst_78 {dimension_numbers = #tpu.dot_dimension_numbers<[1], [0], [0], [1], [0, 0, 1, 1], [], []>} : vector<8x32xf32>, vector<32x128xf32>, vector<8x128xf32> -> vector<8x128xf32>
    %c0_79 = arith.constant 0 : index
    %c0_80 = arith.constant 0 : index
    %186 = vector.load %arg11[%c0_79, %c0_80] : memref<1x128xf32, #tpu.memory_space<vmem>>, vector<1x128xf32>
    %187 = vector.broadcast %186 : vector<1x128xf32> to vector<8x128xf32>
    %188 = arith.addf %185, %187 : vector<8x128xf32>
    %cst_81 = arith.constant 0.000000e+00 : f32
    %189 = vector.broadcast %cst_81 : f32 to vector<8x128xf32>
    %190 = arith.maximumf %188, %189 : vector<8x128xf32>
    %c0_82 = arith.constant 0 : index
    %c0_83 = arith.constant 0 : index
    %191 = vector.load %arg12[%c0_82, %c0_83] : memref<128x32xf32, #tpu.memory_space<vmem>>, vector<128x32xf32>
    %cst_84 = arith.constant dense<0.000000e+00> : vector<8x32xf32>
    %192 = tpu.matmul %190, %191, %cst_84 {dimension_numbers = #tpu.dot_dimension_numbers<[1], [0], [0], [1], [0, 0, 1, 1], [], []>} : vector<8x128xf32>, vector<128x32xf32>, vector<8x32xf32> -> vector<8x32xf32>
    %193 = arith.addf %159, %192 : vector<8x32xf32>
    %c0_85 = arith.constant 0 : index
    %c0_86 = arith.constant 0 : index
    %194 = vector.load %arg13[%c0_85, %c0_86] : memref<1x32xf32, #tpu.memory_space<vmem>>, vector<1x32xf32>
    %195 = vector.broadcast %194 : vector<1x32xf32> to vector<8x32xf32>
    %196 = arith.addf %193, %195 : vector<8x32xf32>
    %c0_87 = arith.constant 0 : index
    %c0_88 = arith.constant 0 : index
    %c0_89 = arith.constant 0 : index
    %197 = vector.load %arg14[%c0_87, %c0_88, %c0_89] : memref<1x8x32xf32, #tpu.memory_space<vmem>>, vector<1x8x32xf32>
    %198 = vector.shape_cast %197 : vector<1x8x32xf32> to vector<8x32xf32>
    %199 = vector.shape_cast %196 : vector<8x32xf32> to vector<1x8x32xf32>
    tpu.vector_store %arg14[%c0_87, %c0_88, %c0_89], %199 {strides = array<i32>} : memref<1x8x32xf32, #tpu.memory_space<vmem>>, vector<1x8x32xf32>,
    return
  }
  func.func @transform_0(%arg0: i32) -> (i32, i32, i32) {
    %c0_i32 = arith.constant 0 : i32
    %c0_i32_0 = arith.constant 0 : i32
    %c0_i32_1 = arith.constant 0 : i32
    return %arg0, %c0_i32, %c0_i32_0 : i32, i32, i32
  }
  func.func @transform_1(%arg0: i32) -> (i32, i32) {
    %c0_i32 = arith.constant 0 : i32
    %c0_i32_0 = arith.constant 0 : i32
    %c0_i32_1 = arith.constant 0 : i32
    return %c0_i32, %c0_i32_0 : i32, i32
  }
  func.func @transform_2(%arg0: i32) -> (i32, i32) {
    %c0_i32 = arith.constant 0 : i32
    %c0_i32_0 = arith.constant 0 : i32
    %c0_i32_1 = arith.constant 0 : i32
    return %c0_i32, %c0_i32_0 : i32, i32
  }
  func.func @transform_3(%arg0: i32) -> (i32, i32) {
    %c0_i32 = arith.constant 0 : i32
    %c0_i32_0 = arith.constant 0 : i32
    %c0_i32_1 = arith.constant 0 : i32
    return %c0_i32, %c0_i32_0 : i32, i32
  }
  func.func @transform_4(%arg0: i32) -> (i32, i32) {
    %c0_i32 = arith.constant 0 : i32
    %c0_i32_0 = arith.constant 0 : i32
    %c0_i32_1 = arith.constant 0 : i32
    return %c0_i32, %c0_i32_0 : i32, i32
  }
  func.func @transform_5(%arg0: i32) -> (i32, i32) {
    %c0_i32 = arith.constant 0 : i32
    %c0_i32_0 = arith.constant 0 : i32
    %c0_i32_1 = arith.constant 0 : i32
    return %c0_i32, %c0_i32_0 : i32, i32
  }
  func.func @transform_6(%arg0: i32) -> (i32, i32) {
    %c0_i32 = arith.constant 0 : i32
    %c0_i32_0 = arith.constant 0 : i32
    %c0_i32_1 = arith.constant 0 : i32
    return %c0_i32, %c0_i32_0 : i32, i32
  }
  func.func @transform_7(%arg0: i32) -> (i32, i32) {
    %c0_i32 = arith.constant 0 : i32
    %c0_i32_0 = arith.constant 0 : i32
    %c0_i32_1 = arith.constant 0 : i32
    return %c0_i32, %c0_i32_0 : i32, i32
  }
  func.func @transform_8(%arg0: i32) -> (i32, i32) {
    %c0_i32 = arith.constant 0 : i32
    %c0_i32_0 = arith.constant 0 : i32
    %c0_i32_1 = arith.constant 0 : i32
    return %c0_i32, %c0_i32_0 : i32, i32
  }
  func.func @transform_9(%arg0: i32) -> (i32, i32) {
    %c0_i32 = arith.constant 0 : i32
    %c0_i32_0 = arith.constant 0 : i32
    %c0_i32_1 = arith.constant 0 : i32
    return %c0_i32, %c0_i32_0 : i32, i32
  }
  func.func @transform_10(%arg0: i32) -> (i32, i32) {
    %c0_i32 = arith.constant 0 : i32
    %c0_i32_0 = arith.constant 0 : i32
    %c0_i32_1 = arith.constant 0 : i32
    return %c0_i32, %c0_i32_0 : i32, i32
  }
  func.func @transform_11(%arg0: i32) -> (i32, i32) {
    %c0_i32 = arith.constant 0 : i32
    %c0_i32_0 = arith.constant 0 : i32
    %c0_i32_1 = arith.constant 0 : i32
    return %c0_i32, %c0_i32_0 : i32, i32
  }
  func.func @transform_12(%arg0: i32) -> (i32, i32) {
    %c0_i32 = arith.constant 0 : i32
    %c0_i32_0 = arith.constant 0 : i32
    %c0_i32_1 = arith.constant 0 : i32
    return %c0_i32, %c0_i32_0 : i32, i32
  }
  func.func @transform_13(%arg0: i32) -> (i32, i32, i32) {
    %c0_i32 = arith.constant 0 : i32
    %c0_i32_0 = arith.constant 0 : i32
    %c0_i32_1 = arith.constant 0 : i32
    return %arg0, %c0_i32, %c0_i32_0 : i32, i32, i32
  }
}

</mosaic_0001>

<llo_original>
// kernel: tpu_custom_call.1
$region0: #{tpu_custom_call.1}
  #allocation0 [shape = 'u32[]', space=smem, size = 0x4, offset = 0x4, fixed_abs, tag = 'smem constant byte address 0x4 - core index']
  #allocation1 [shape = 'u32[72,128]{1,0:T(1,128)}', space=vmem, size = 0x9000, scoped, tag = 'internal scratch']
  %s0 = inlined_call_operand.vmem [shape: f32[2,8,32], index: 0, kind: input, shape index: {}]
  %s1 = inlined_call_operand.vmem [shape: f32[1,32], index: 1, kind: input, shape index: {}]
  %s2 = inlined_call_operand.vmem [shape: f32[1,32], index: 2, kind: input, shape index: {}]
  %s3 = inlined_call_operand.vmem [shape: f32[32,384], index: 3, kind: input, shape index: {}]
  %s4 = inlined_call_operand.vmem [shape: f32[1,384], index: 4, kind: input, shape index: {}]
  %s5 = inlined_call_operand.vmem [shape: f32[128,32], index: 5, kind: input, shape index: {}]
  %s6 = inlined_call_operand.vmem [shape: f32[1,32], index: 6, kind: input, shape index: {}]
  %s7 = inlined_call_operand.vmem [shape: f32[1,32], index: 7, kind: input, shape index: {}]
  %s8 = inlined_call_operand.vmem [shape: f32[1,32], index: 8, kind: input, shape index: {}]
  %s9 = inlined_call_operand.vmem [shape: f32[32,128], index: 9, kind: input, shape index: {}]
  %s10 = inlined_call_operand.vmem [shape: f32[1,128], index: 10, kind: input, shape index: {}]
  %s11 = inlined_call_operand.vmem [shape: f32[128,32], index: 11, kind: input, shape index: {}]
  %s12 = inlined_call_operand.vmem [shape: f32[1,32], index: 12, kind: input, shape index: {}]
  %s13 = inlined_call_operand.hbm [shape: f32[2,8,32], index: 13, kind: output, shape index: {}]
  %s14 = sld [smem:[#allocation0]]
  $region85: #{tpu_custom_call.1} parent=0
    _
  %s16 = ssub.s32 1, %s14
  %s17 = scalar_select 0, %s16, %s14
  $region1: #{tpu_custom_call.1} parent=0
    #allocation2 [shape = 'u8[8192]{0}', space=vmem, size = 0x2000, scoped, tag = 'output window, operand 0']
    #allocation3 [shape = 's32[2]{0}', space=sflag, size = 0x8, scoped, tag = 'scoped memory for tpu_custom_call.1']
    %18 = vsyncpa [#allocation3], 0
    %s19 = scalar_lea.sflag [#allocation3], 1
    %20 = vsyncpa %s19, 0
    loop: start=0, step=1, limit=4
    $region2: #{tpu_custom_call.1} parent=1 // loop_pre_header
      _
    $region3: #{tpu_custom_call.1} parent=1 // loop_header
      %s22 = sphi 0, %s26
      %p23 = scmp.ge.s32.totalorder %s22, 4
      %s32 = sphi 0, %s34
      %s35 = sphi 0, %s32
      %s36 = sphi 0, %s35
      %s52 = sphi 0, %s36
      %s56 = sphi 0, %s56
      %s58 = sphi 0, %s56
      %s59 = sphi 0, %s58
      %s73 = sphi 0, %s59
      %s77 = sphi 0, %s77
      %s79 = sphi 0, %s77
      %s80 = sphi 0, %s79
      %s94 = sphi 0, %s80
      %s98 = sphi 0, %s98
      %s100 = sphi 0, %s98
      %s101 = sphi 0, %s100
      %s115 = sphi 0, %s101
      %s119 = sphi 0, %s119
      %s121 = sphi 0, %s119
      %s122 = sphi 0, %s121
      %s136 = sphi 0, %s122
      %s140 = sphi 0, %s140
      %s142 = sphi 0, %s140
      %s143 = sphi 0, %s142
      %s157 = sphi 0, %s143
      %s161 = sphi 0, %s161
      %s163 = sphi 0, %s161
      %s164 = sphi 0, %s163
      %s178 = sphi 0, %s164
      %s182 = sphi 0, %s182
      %s184 = sphi 0, %s182
      %s185 = sphi 0, %s184
      %s199 = sphi 0, %s185
      %s203 = sphi 0, %s203
      %s205 = sphi 0, %s203
      %s206 = sphi 0, %s205
      %s220 = sphi 0, %s206
      %s224 = sphi 0, %s224
      %s226 = sphi 0, %s224
      %s227 = sphi 0, %s226
      %s241 = sphi 0, %s227
      %s245 = sphi 0, %s245
      %s247 = sphi 0, %s245
      %s248 = sphi 0, %s247
      %s262 = sphi 0, %s248
      %s266 = sphi 0, %s266
      %s268 = sphi 0, %s266
      %s269 = sphi 0, %s268
      %s283 = sphi 0, %s269
      %s287 = sphi 0, %s287
      %s289 = sphi 0, %s287
      %s290 = sphi 0, %s289
      %s304 = sphi 0, %s290
      %s310 = sphi 0, %s312
      %s313 = sphi 0, %s310
      %s314 = sphi 0, %s313
      %s330 = sphi 0, %s314
    $region4: #{tpu_custom_call.1} parent=1 // loop_header_branch
      %25 = sbr.rel (%p23) target = $region8
    $region5: #{tpu_custom_call.1} parent=1 // loop_body
      %s27 = ssub.s32 %s22, 1
      %s28 = ssub.s32 %s22, 2
      %s29 = sadd.s32 %s22, 1
      %s30 = ssub.s32 %s22, %s29
      %p31 = scmp.eq.s32.totalorder %s30, 0
      %s33 = sadd.s32 %s32, 1
      %s34 = scalar_select %p31, %s32, %s33
      %p37 = pneg %p31
      %p38 = scmp.eq.s32.totalorder %s22, 1
      %p39 = por %p37, %p38
      %p40 = scmp.ne.s32.totalorder %s32, %s35
      %p41 = scmp.eq.s32.totalorder %s22, 0
      %p42 = por %p40, %p41
      %p43 = scmp.ne.s32.totalorder %s32, %s35
      %p44 = scmp.eq.s32.totalorder %s27, 1
      %p45 = por %p43, %p44
      %p46 = scmp.ne.s32.totalorder %s35, %s36
      %p47 = scmp.eq.s32.totalorder %s27, 0
      %p48 = por %p46, %p47
      %p49 = scmp.ne.s32.totalorder %s35, %s36
      %p50 = scmp.eq.s32.totalorder %s28, 1
      %p51 = por %p49, %p50
      %p53 = scmp.ne.s32.totalorder %s36, %s52
      %p54 = scmp.eq.s32.totalorder %s28, 0
      %p55 = por %p53, %p54
      %s57 = sadd.s32 %s56, 1
      %p60 = scmp.eq.s32.totalorder %s22, 1
      %p61 = scmp.ne.s32.totalorder %s56, %s58
      %p62 = scmp.eq.s32.totalorder %s22, 0
      %p63 = por %p61, %p62
      %p64 = scmp.ne.s32.totalorder %s56, %s58
      %p65 = scmp.eq.s32.totalorder %s27, 1
      %p66 = por %p64, %p65
      %p67 = scmp.ne.s32.totalorder %s58, %s59
      %p68 = scmp.eq.s32.totalorder %s27, 0
      %p69 = por %p67, %p68
      %p70 = scmp.ne.s32.totalorder %s58, %s59
      %p71 = scmp.eq.s32.totalorder %s28, 1
      %p72 = por %p70, %p71
      %p74 = scmp.ne.s32.totalorder %s59, %s73
      %p75 = scmp.eq.s32.totalorder %s28, 0
      %p76 = por %p74, %p75
      %s78 = sadd.s32 %s77, 1
      %p81 = scmp.eq.s32.totalorder %s22, 1
      %p82 = scmp.ne.s32.totalorder %s77, %s79
      %p83 = scmp.eq.s32.totalorder %s22, 0
      %p84 = por %p82, %p83
      %p85 = scmp.ne.s32.totalorder %s77, %s79
      %p86 = scmp.eq.s32.totalorder %s27, 1
      %p87 = por %p85, %p86
      %p88 = scmp.ne.s32.totalorder %s79, %s80
      %p89 = scmp.eq.s32.totalorder %s27, 0
      %p90 = por %p88, %p89
      %p91 = scmp.ne.s32.totalorder %s79, %s80
      %p92 = scmp.eq.s32.totalorder %s28, 1
      %p93 = por %p91, %p92
      %p95 = scmp.ne.s32.totalorder %s80, %s94
      %p96 = scmp.eq.s32.totalorder %s28, 0
      %p97 = por %p95, %p96
      %s99 = sadd.s32 %s98, 1
      %p102 = scmp.eq.s32.totalorder %s22, 1
      %p103 = scmp.ne.s32.totalorder %s98, %s100
      %p104 = scmp.eq.s32.totalorder %s22, 0
      %p105 = por %p103, %p104
      %p106 = scmp.ne.s32.totalorder %s98, %s100
      %p107 = scmp.eq.s32.totalorder %s27, 1
      %p108 = por %p106, %p107
      %p109 = scmp.ne.s32.totalorder %s100, %s101
      %p110 = scmp.eq.s32.totalorder %s27, 0
      %p111 = por %p109, %p110
      %p112 = scmp.ne.s32.totalorder %s100, %s101
      %p113 = scmp.eq.s32.totalorder %s28, 1
      %p114 = por %p112, %p113
      %p116 = scmp.ne.s32.totalorder %s101, %s115
      %p117 = scmp.eq.s32.totalorder %s28, 0
      %p118 = por %p116, %p117
      %s120 = sadd.s32 %s119, 1
      %p123 = scmp.eq.s32.totalorder %s22, 1
      %p124 = scmp.ne.s32.totalorder %s119, %s121
      %p125 = scmp.eq.s32.totalorder %s22, 0
      %p126 = por %p124, %p125
      %p127 = scmp.ne.s32.totalorder %s119, %s121
      %p128 = scmp.eq.s32.totalorder %s27, 1
      %p129 = por %p127, %p128
      %p130 = scmp.ne.s32.totalorder %s121, %s122
      %p131 = scmp.eq.s32.totalorder %s27, 0
      %p132 = por %p130, %p131
      %p133 = scmp.ne.s32.totalorder %s121, %s122
      %p134 = scmp.eq.s32.totalorder %s28, 1
      %p135 = por %p133, %p134
      %p137 = scmp.ne.s32.totalorder %s122, %s136
      %p138 = scmp.eq.s32.totalorder %s28, 0
      %p139 = por %p137, %p138
      %s141 = sadd.s32 %s140, 1
      %p144 = scmp.eq.s32.totalorder %s22, 1
      %p145 = scmp.ne.s32.totalorder %s140, %s142
      %p146 = scmp.eq.s32.totalorder %s22, 0
      %p147 = por %p145, %p146
      %p148 = scmp.ne.s32.totalorder %s140, %s142
      %p149 = scmp.eq.s32.totalorder %s27, 1
      %p150 = por %p148, %p149
      %p151 = scmp.ne.s32.totalorder %s142, %s143
      %p152 = scmp.eq.s32.totalorder %s27, 0
      %p153 = por %p151, %p152
      %p154 = scmp.ne.s32.totalorder %s142, %s143
      %p155 = scmp.eq.s32.totalorder %s28, 1
      %p156 = por %p154, %p155
      %p158 = scmp.ne.s32.totalorder %s143, %s157
      %p159 = scmp.eq.s32.totalorder %s28, 0
      %p160 = por %p158, %p159
      %s162 = sadd.s32 %s161, 1
      %p165 = scmp.eq.s32.totalorder %s22, 1
      %p166 = scmp.ne.s32.totalorder %s161, %s163
      %p167 = scmp.eq.s32.totalorder %s22, 0
      %p168 = por %p166, %p167
      %p169 = scmp.ne.s32.totalorder %s161, %s163
      %p170 = scmp.eq.s32.totalorder %s27, 1
      %p171 = por %p169, %p170
      %p172 = scmp.ne.s32.totalorder %s163, %s164
      %p173 = scmp.eq.s32.totalorder %s27, 0
      %p174 = por %p172, %p173
      %p175 = scmp.ne.s32.totalorder %s163, %s164
      %p176 = scmp.eq.s32.totalorder %s28, 1
      %p177 = por %p175, %p176
      %p179 = scmp.ne.s32.totalorder %s164, %s178
      %p180 = scmp.eq.s32.totalorder %s28, 0
      %p181 = por %p179, %p180
      %s183 = sadd.s32 %s182, 1
      %p186 = scmp.eq.s32.totalorder %s22, 1
      %p187 = scmp.ne.s32.totalorder %s182, %s184
      %p188 = scmp.eq.s32.totalorder %s22, 0
      %p189 = por %p187, %p188
      %p190 = scmp.ne.s32.totalorder %s182, %s184
      %p191 = scmp.eq.s32.totalorder %s27, 1
      %p192 = por %p190, %p191
      %p193 = scmp.ne.s32.totalorder %s184, %s185
      %p194 = scmp.eq.s32.totalorder %s27, 0
      %p195 = por %p193, %p194
      %p196 = scmp.ne.s32.totalorder %s184, %s185
      %p197 = scmp.eq.s32.totalorder %s28, 1
      %p198 = por %p196, %p197
      %p200 = scmp.ne.s32.totalorder %s185, %s199
      %p201 = scmp.eq.s32.totalorder %s28, 0
      %p202 = por %p200, %p201
      %s204 = sadd.s32 %s203, 1
      %p207 = scmp.eq.s32.totalorder %s22, 1
      %p208 = scmp.ne.s32.totalorder %s203, %s205
      %p209 = scmp.eq.s32.totalorder %s22, 0
      %p210 = por %p208, %p209
      %p211 = scmp.ne.s32.totalorder %s203, %s205
      %p212 = scmp.eq.s32.totalorder %s27, 1
      %p213 = por %p211, %p212
      %p214 = scmp.ne.s32.totalorder %s205, %s206
      %p215 = scmp.eq.s32.totalorder %s27, 0
      %p216 = por %p214, %p215
      %p217 = scmp.ne.s32.totalorder %s205, %s206
      %p218 = scmp.eq.s32.totalorder %s28, 1
      %p219 = por %p217, %p218
      %p221 = scmp.ne.s32.totalorder %s206, %s220
      %p222 = scmp.eq.s32.totalorder %s28, 0
      %p223 = por %p221, %p222
      %s225 = sadd.s32 %s224, 1
      %p228 = scmp.eq.s32.totalorder %s22, 1
      %p229 = scmp.ne.s32.totalorder %s224, %s226
      %p230 = scmp.eq.s32.totalorder %s22, 0
      %p231 = por %p229, %p230
      %p232 = scmp.ne.s32.totalorder %s224, %s226
      %p233 = scmp.eq.s32.totalorder %s27, 1
      %p234 = por %p232, %p233
      %p235 = scmp.ne.s32.totalorder %s226, %s227
      %p236 = scmp.eq.s32.totalorder %s27, 0
      %p237 = por %p235, %p236
      %p238 = scmp.ne.s32.totalorder %s226, %s227
      %p239 = scmp.eq.s32.totalorder %s28, 1
      %p240 = por %p238, %p239
      %p242 = scmp.ne.s32.totalorder %s227, %s241
      %p243 = scmp.eq.s32.totalorder %s28, 0
      %p244 = por %p242, %p243
      %s246 = sadd.s32 %s245, 1
      %p249 = scmp.eq.s32.totalorder %s22, 1
      %p250 = scmp.ne.s32.totalorder %s245, %s247
      %p251 = scmp.eq.s32.totalorder %s22, 0
      %p252 = por %p250, %p251
      %p253 = scmp.ne.s32.totalorder %s245, %s247
      %p254 = scmp.eq.s32.totalorder %s27, 1
      %p255 = por %p253, %p254
      %p256 = scmp.ne.s32.totalorder %s247, %s248
      %p257 = scmp.eq.s32.totalorder %s27, 0
      %p258 = por %p256, %p257
      %p259 = scmp.ne.s32.totalorder %s247, %s248
      %p260 = scmp.eq.s32.totalorder %s28, 1
      %p261 = por %p259, %p260
      %p263 = scmp.ne.s32.totalorder %s248, %s262
      %p264 = scmp.eq.s32.totalorder %s28, 0
      %p265 = por %p263, %p264
      %s267 = sadd.s32 %s266, 1
      %p270 = scmp.eq.s32.totalorder %s22, 1
      %p271 = scmp.ne.s32.totalorder %s266, %s268
      %p272 = scmp.eq.s32.totalorder %s22, 0
      %p273 = por %p271, %p272
      %p274 = scmp.ne.s32.totalorder %s266, %s268
      %p275 = scmp.eq.s32.totalorder %s27, 1
      %p276 = por %p274, %p275
      %p277 = scmp.ne.s32.totalorder %s268, %s269
      %p278 = scmp.eq.s32.totalorder %s27, 0
      %p279 = por %p277, %p278
      %p280 = scmp.ne.s32.totalorder %s268, %s269
      %p281 = scmp.eq.s32.totalorder %s28, 1
      %p282 = por %p280, %p281
      %p284 = scmp.ne.s32.totalorder %s269, %s283
      %p285 = scmp.eq.s32.totalorder %s28, 0
      %p286 = por %p284, %p285
      %s288 = sadd.s32 %s287, 1
      %p291 = scmp.eq.s32.totalorder %s22, 1
      %p292 = scmp.ne.s32.totalorder %s287, %s289
      %p293 = scmp.eq.s32.totalorder %s22, 0
      %p294 = por %p292, %p293
      %p295 = scmp.ne.s32.totalorder %s287, %s289
      %p296 = scmp.eq.s32.totalorder %s27, 1
      %p297 = por %p295, %p296
      %p298 = scmp.ne.s32.totalorder %s289, %s290
      %p299 = scmp.eq.s32.totalorder %s27, 0
      %p300 = por %p298, %p299
      %p301 = scmp.ne.s32.totalorder %s289, %s290
      %p302 = scmp.eq.s32.totalorder %s28, 1
      %p303 = por %p301, %p302
      %p305 = scmp.ne.s32.totalorder %s290, %s304
      %p306 = scmp.eq.s32.totalorder %s28, 0
      %p307 = por %p305, %p306
      %s308 = ssub.s32 %s22, %s29
      %p309 = scmp.eq.s32.totalorder %s308, 0
      %s311 = sadd.s32 %s310, 1
      %s312 = scalar_select %p309, %s310, %s311
      %p315 = pneg %p309
      %p316 = scmp.eq.s32.totalorder %s22, 1
      %p317 = por %p315, %p316
      %p318 = scmp.ne.s32.totalorder %s310, %s313
      %p319 = scmp.eq.s32.totalorder %s22, 0
      %p320 = por %p318, %p319
      %p321 = scmp.ne.s32.totalorder %s310, %s313
      %p322 = scmp.eq.s32.totalorder %s27, 1
      %p323 = por %p321, %p322
      %p324 = scmp.ne.s32.totalorder %s313, %s314
      %p325 = scmp.eq.s32.totalorder %s27, 0
      %p326 = por %p324, %p325
      %p327 = scmp.ne.s32.totalorder %s313, %s314
      %p328 = scmp.eq.s32.totalorder %s28, 1
      %p329 = por %p327, %p328
      %p331 = scmp.ne.s32.totalorder %s314, %s330
      %p332 = scmp.eq.s32.totalorder %s28, 0
      %p333 = por %p331, %p332
      %p334 = scmp.le.s32.totalorder 1, %s22
      %p335 = scmp.lt.s32.totalorder %s22, 3
      %p336 = pnand %p334, %p335
      %p337 = pneg %p336
      // Predicated region
      $region9: #{tpu_custom_call.1} parent=5 // pred_check
        _
      $region10: #{tpu_custom_call.1} parent=5 // pred_check_branch
        %339 = sbr.rel (%p336) target = $region12
      $region11: #{tpu_custom_call.1} parent=5 // pred_region
        %s340 = ssub.s32 %s22, 1
        // Predicated region
        $region13: #{tpu_custom_call.1} parent=11 // pred_check
          %p341 = pneg %p69
        $region14: #{tpu_custom_call.1} parent=11 // pred_check_branch
          %343 = sbr.rel (%p341) target = $region16
        $region15: #{tpu_custom_call.1} parent=11 // pred_region
          _
        $region16: #{tpu_custom_call.1} parent=11 // pred_fallthru
          _
        // Predicated region
        $region17: #{tpu_custom_call.1} parent=11 // pred_check
          %p344 = pneg %p90
        $region18: #{tpu_custom_call.1} parent=11 // pred_check_branch
          %346 = sbr.rel (%p344) target = $region20
        $region19: #{tpu_custom_call.1} parent=11 // pred_region
          _
        $region20: #{tpu_custom_call.1} parent=11 // pred_fallthru
          _
        // Predicated region
        $region21: #{tpu_custom_call.1} parent=11 // pred_check
          %p347 = pneg %p111
        $region22: #{tpu_custom_call.1} parent=11 // pred_check_branch
          %349 = sbr.rel (%p347) target = $region24
        $region23: #{tpu_custom_call.1} parent=11 // pred_region
          _
        $region24: #{tpu_custom_call.1} parent=11 // pred_fallthru
          _
        // Predicated region
        $region25: #{tpu_custom_call.1} parent=11 // pred_check
          %p350 = pneg %p132
        $region26: #{tpu_custom_call.1} parent=11 // pred_check_branch
          %352 = sbr.rel (%p350) target = $region28
        $region27: #{tpu_custom_call.1} parent=11 // pred_region
          _
        $region28: #{tpu_custom_call.1} parent=11 // pred_fallthru
          _
        // Predicated region
        $region29: #{tpu_custom_call.1} parent=11 // pred_check
          %p353 = pneg %p153
        $region30: #{tpu_custom_call.1} parent=11 // pred_check_branch
          %355 = sbr.rel (%p353) target = $region32
        $region31: #{tpu_custom_call.1} parent=11 // pred_region
          _
        $region32: #{tpu_custom_call.1} parent=11 // pred_fallthru
          _
        // Predicated region
        $region33: #{tpu_custom_call.1} parent=11 // pred_check
          %p356 = pneg %p174
        $region34: #{tpu_custom_call.1} parent=11 // pred_check_branch
          %358 = sbr.rel (%p356) target = $region36
        $region35: #{tpu_custom_call.1} parent=11 // pred_region
          _
        $region36: #{tpu_custom_call.1} parent=11 // pred_fallthru
          _
        // Predicated region
        $region37: #{tpu_custom_call.1} parent=11 // pred_check
          %p359 = pneg %p195
        $region38: #{tpu_custom_call.1} parent=11 // pred_check_branch
          %361 = sbr.rel (%p359) target = $region40
        $region39: #{tpu_custom_call.1} parent=11 // pred_region
          _
        $region40: #{tpu_custom_call.1} parent=11 // pred_fallthru
          _
        // Predicated region
        $region41: #{tpu_custom_call.1} parent=11 // pred_check
          %p362 = pneg %p216
        $region42: #{tpu_custom_call.1} parent=11 // pred_check_branch
          %364 = sbr.rel (%p362) target = $region44
        $region43: #{tpu_custom_call.1} parent=11 // pred_region
          _
        $region44: #{tpu_custom_call.1} parent=11 // pred_fallthru
          _
        // Predicated region
        $region45: #{tpu_custom_call.1} parent=11 // pred_check
          %p365 = pneg %p237
        $region46: #{tpu_custom_call.1} parent=11 // pred_check_branch
          %367 = sbr.rel (%p365) target = $region48
        $region47: #{tpu_custom_call.1} parent=11 // pred_region
          _
        $region48: #{tpu_custom_call.1} parent=11 // pred_fallthru
          _
        // Predicated region
        $region49: #{tpu_custom_call.1} parent=11 // pred_check
          %p368 = pneg %p258
        $region50: #{tpu_custom_call.1} parent=11 // pred_check_branch
          %370 = sbr.rel (%p368) target = $region52
        $region51: #{tpu_custom_call.1} parent=11 // pred_region
          _
        $region52: #{tpu_custom_call.1} parent=11 // pred_fallthru
          _
        // Predicated region
        $region53: #{tpu_custom_call.1} parent=11 // pred_check
          %p371 = pneg %p279
        $region54: #{tpu_custom_call.1} parent=11 // pred_check_branch
          %373 = sbr.rel (%p371) target = $region56
        $region55: #{tpu_custom_call.1} parent=11 // pred_region
          _
        $region56: #{tpu_custom_call.1} parent=11 // pred_fallthru
          _
        // Predicated region
        $region57: #{tpu_custom_call.1} parent=11 // pred_check
          %p374 = pneg %p300
        $region58: #{tpu_custom_call.1} parent=11 // pred_check_branch
          %376 = sbr.rel (%p374) target = $region60
        $region59: #{tpu_custom_call.1} parent=11 // pred_region
          _
        $region60: #{tpu_custom_call.1} parent=11 // pred_fallthru
          _
      $region12: #{tpu_custom_call.1} parent=5 // pred_fallthru
        _
      %p377 = scmp.lt.s32.totalorder %s22, 2
      // Predicated region
      $region61: #{tpu_custom_call.1} parent=5 // pred_check
        %p378 = pneg %p377
      $region62: #{tpu_custom_call.1} parent=5 // pred_check_branch
        %380 = sbr.rel (%p378) target = $region64
      $region63: #{tpu_custom_call.1} parent=5 // pred_region
        // Predicated region
        $region65: #{tpu_custom_call.1} parent=63 // pred_check
          %p381 = pneg %p42
        $region66: #{tpu_custom_call.1} parent=63 // pred_check_branch
          %383 = sbr.rel (%p381) target = $region68
        $region67: #{tpu_custom_call.1} parent=63 // pred_region
          %p384 = scmp.lt.s32.totalorder %s22, 1
          %s385 = scalar_select %p384, %s22, 1
          %s386 = smul.addr %s385, 8
          %s387 = scalar_lea.vmem %s0, %s386
        $region68: #{tpu_custom_call.1} parent=63 // pred_fallthru
          _
      $region64: #{tpu_custom_call.1} parent=5 // pred_fallthru
        _
      %p388 = scmp.le.s32.totalorder 1, %s22
      %p389 = scmp.lt.s32.totalorder %s22, 3
      %p390 = pnand %p388, %p389
      %p391 = pneg %p390
      // Predicated region
      $region69: #{tpu_custom_call.1} parent=5 // pred_check
        _
      $region70: #{tpu_custom_call.1} parent=5 // pred_check_branch
        %393 = sbr.rel (%p390) target = $region72
      $region71: #{tpu_custom_call.1} parent=5 // pred_region
        %s394 = ssub.s32 %s22, 1
        %p395 = scmp.lt.s32.totalorder %s27, 1
        %s396 = scalar_select %p395, %s27, 1
        %s397 = smul.addr %s396, 8
        %s398 = scalar_lea.vmem %s0, %s397
        %p399 = pneg %p48
        %p400 = pneg %p45
        %p401 = pneg %p69
        %p402 = pneg %p66
        %p403 = pneg %p90
        %p404 = pneg %p87
        %p405 = pneg %p111
        %p406 = pneg %p108
        %p407 = pneg %p132
        %p408 = pneg %p129
        %p409 = pneg %p153
        %p410 = pneg %p150
        %p411 = pneg %p174
        %p412 = pneg %p171
        %p413 = pneg %p195
        %p414 = pneg %p192
        %p415 = pneg %p216
        %p416 = pneg %p213
        %p417 = pneg %p237
        %p418 = pneg %p234
        %p419 = pneg %p258
        %p420 = pneg %p255
        %p421 = pneg %p279
        %p422 = pneg %p276
        %p423 = pneg %p300
        %p424 = pneg %p297
        %p425 = pneg %p326
        %p426 = pneg %p323
        %s427 = sand.u32 %s313, 1
        %s428 = scalar_lea.sflag [#allocation3], %s427
        %s429 = sand.u32 %s313, 1
        %s430 = smul.addr %s429, 8
        %s431 = scalar_lea.vmem [#allocation2], %s430
        %p432 = scmp.lt.s32.totalorder %s27, 1
        %s433 = scalar_select %p432, %s27, 1
        %s434 = smul.addr %s433, 8
        %s435 = scalar_lea.vmem %s0, %s434
        %v436 = vld [vmem:[%s435] sm:$0xff]
        %v437 = vld [vmem:[%s1] sm:$0x1]
        %v438 = vld [vmem:[%s2] sm:$0x1]
        %vm439 = vcmask 261120
        %v440 = vsel %vm439, %v436, 0.0
        %441 = vadd.xlane.f32.xlu0 %v440
        %v442 = vpop.xlane.xlu0 %441
        %v443 = vrcp.pop 32.0
        %v444 = vmul.f32 32.0, %v443
        %v445 = vsub.f32 1.0, %v444
        %v446 = vmul.f32 %v443, %v445
        %v447 = vadd.f32 %v443, %v446
        %vm448 = vweird.f32 %v443
        %v449 = vsel %vm448, %v443, %v447
        %v450 = vmul.f32 %v442, %v449
        %v451 = vsub.f32 %v436, %v450
        %v452 = vmul.f32 %v451, %v451
        %v453 = vsel %vm439, %v452, 0.0
        %454 = vadd.xlane.f32.xlu0 %v453
        %v455 = vpop.xlane.xlu0 %454
        %v456 = vmul.f32 %v455, %v449
        %v457 = vadd.f32 %v456, 1e-05
        %v458 = vrsqrt.pop %v457
        %v459 = vmul.f32 %v458, %v457
        %v460 = vmul.f32 %v459, %v458
        %v461 = vmul.f32 0.5, %v460
        %v462 = vsub.f32 1.5, %v461
        %v463 = vmul.f32 %v458, %v462
        %vm464 = vweird.f32 %v457
        %vm465 = vweird.f32 %v458
        %vm466 = vmor %vm464, %vm465
        %v467 = vsel %vm466, %v458, %v463
        %v468 = vmul.f32 %v451, %v467
        %v470 = vperm.slane %v437, 0
        %v472 = vmul.f32 %v468, %v470
        %v474 = vperm.slane %v438, 0
        %v476 = vadd.f32 %v472, %v474
        %v477 = vld [vmem:[%s3] sm:$0xff]
        %v478 = vld [vmem:[%s3 + $0x8] sm:$0xff]
        %v479 = vld [vmem:[%s3 + $0x10] sm:$0xff]
        %v480 = vld [vmem:[%s3 + $0x18] sm:$0xff]
        %v481 = vld [vmem:[%s3 + $0x20] sm:$0xff]
        %v482 = vld [vmem:[%s3 + $0x28] sm:$0xff]
        %v483 = vld [vmem:[%s3 + $0x30] sm:$0xff]
        %v484 = vld [vmem:[%s3 + $0x38] sm:$0xff]
        %v485 = vld [vmem:[%s3 + $0x40] sm:$0xff]
        %v486 = vld [vmem:[%s3 + $0x48] sm:$0xff]
        %v487 = vld [vmem:[%s3 + $0x50] sm:$0xff]
        %v488 = vld [vmem:[%s3 + $0x58] sm:$0xff]
        %v489 = vld [vmem:[%s4] sm:$0x7]
        %v491 = vperm.slane %v489, 0
        %v492 = vperm.slane %v489, 1
        %v493 = vperm.slane %v489, 2
        %v498 = vsel %vm439, %v476, 0
        %500 = vmatpush.msra.mxu0 0.0
        %501 = vmatpush.msra.mxu0 0.0
        %502 = vmatpush.msra.mxu0 0.0
        %503 = vmatpush.msra.mxu0 0.0
        %504 = vmatpush.msra.mxu0 0.0
        %505 = vmatpush.msra.mxu0 0.0
        %506 = vmatpush.msra.mxu0 0.0
        %507 = vmatpush.msra.mxu0 0.0
        %508 = vmatpush.msra.mxu0 0.0
        %509 = vmatpush.msra.mxu0 0.0
        %510 = vmatpush.msra.mxu0 0.0
        %511 = vmatpush.msra.mxu0 0.0
        %512 = vmatpush.msra.mxu0 %v486
        %513 = vmatpush.msra.mxu0 %v483
        %514 = vmatpush.msra.mxu0 %v480
        %515 = vmatpush.msra.mxu0 %v477
        %516 = vmatmul.f32.gmra.mxu0 %v498
        %v517 = vpop.f32.mrf.mxu0
        %v518 = vadd.f32 %v491, %v517
        %519 = vdwg.mxu0
        %520 = vmatpush.msra.mxu0 0.0
        %521 = vmatpush.msra.mxu0 0.0
        %522 = vmatpush.msra.mxu0 0.0
        %523 = vmatpush.msra.mxu0 0.0
        %524 = vmatpush.msra.mxu0 0.0
        %525 = vmatpush.msra.mxu0 0.0
        %526 = vmatpush.msra.mxu0 0.0
        %527 = vmatpush.msra.mxu0 0.0
        %528 = vmatpush.msra.mxu0 0.0
        %529 = vmatpush.msra.mxu0 0.0
        %530 = vmatpush.msra.mxu0 0.0
        %531 = vmatpush.msra.mxu0 0.0
        %532 = vmatpush.msra.mxu0 %v487
        %533 = vmatpush.msra.mxu0 %v484
        %534 = vmatpush.msra.mxu0 %v481
        %535 = vmatpush.msra.mxu0 %v478
        %536 = vmatmul.f32.gmra.mxu0 %v498
        %v537 = vpop.f32.mrf.mxu0
        %v538 = vadd.f32 %v492, %v537
        %539 = vdwg.mxu0
        %540 = vmatpush.msra.mxu0 0.0
        %541 = vmatpush.msra.mxu0 0.0
        %542 = vmatpush.msra.mxu0 0.0
        %543 = vmatpush.msra.mxu0 0.0
        %544 = vmatpush.msra.mxu0 0.0
        %545 = vmatpush.msra.mxu0 0.0
        %546 = vmatpush.msra.mxu0 0.0
        %547 = vmatpush.msra.mxu0 0.0
        %548 = vmatpush.msra.mxu0 0.0
        %549 = vmatpush.msra.mxu0 0.0
        %550 = vmatpush.msra.mxu0 0.0
        %551 = vmatpush.msra.mxu0 0.0
        %552 = vmatpush.msra.mxu0 %v488
        %553 = vmatpush.msra.mxu0 %v485
        %554 = vmatpush.msra.mxu0 %v482
        %555 = vmatpush.msra.mxu0 %v479
        %556 = vmatmul.f32.gmra.mxu0 %v498
        %v557 = vpop.f32.mrf.mxu0
        %v558 = vadd.f32 %v493, %v557
        %559 = vdwg.mxu0
        %560 = vxpose.xlu0.b32.start [1/16] %v518, 128
        %561 = vxpose.xlu0.b32.cont [2/16] 0.0, 128
        %562 = vxpose.xlu0.b32.cont [3/16] 0.0, 128
        %563 = vxpose.xlu0.b32.cont [4/16] 0.0, 128
        %564 = vxpose.xlu0.b32.cont [5/16] 0.0, 128
        %565 = vxpose.xlu0.b32.cont [6/16] 0.0, 128
        %566 = vxpose.xlu0.b32.cont [7/16] 0.0, 128
        %567 = vxpose.xlu0.b32.cont [8/16] 0.0, 128
        %568 = vxpose.xlu0.b32.cont [9/16] 0.0, 128
        %569 = vxpose.xlu0.b32.cont [10/16] 0.0, 128
        %570 = vxpose.xlu0.b32.cont [11/16] 0.0, 128
        %571 = vxpose.xlu0.b32.cont [12/16] 0.0, 128
        %572 = vxpose.xlu0.b32.cont [13/16] 0.0, 128
        %573 = vxpose.xlu0.b32.cont [14/16] 0.0, 128
        %574 = vxpose.xlu0.b32.cont [15/16] 0.0, 128
        %575 = vxpose.xlu0.b32.end [16/16] 0.0, 128
        %v576 = vpop.trf.xlu0
        %v577 = vpop.trf.xlu0
        %v578 = vpop.trf.xlu0
        %v579 = vpop.trf.xlu0
        %v580 = vpop.trf.xlu0
        %v581 = vpop.trf.xlu0
        %v582 = vpop.trf.xlu0
        %v583 = vpop.trf.xlu0
        %v584 = vpop.trf.xlu0
        %v585 = vpop.trf.xlu0
        %v586 = vpop.trf.xlu0
        %v587 = vpop.trf.xlu0
        %v588 = vpop.trf.xlu0
        %v589 = vpop.trf.xlu0
        %v590 = vpop.trf.xlu0
        %v591 = vpop.trf.xlu0
        %vm592 = vcmask 64512
        %v594 = vsel %vm592, %v576, 0
        %v597 = vsel %vm592, %v577, 0
        %v600 = vsel %vm592, %v578, 0
        %v603 = vsel %vm592, %v579, 0
        %605 = vmatpush.msra.mxu0 0.0
        %606 = vmatpush.msra.mxu0 0.0
        %607 = vmatpush.msra.mxu0 0.0
        %608 = vmatpush.msra.mxu0 0.0
        %609 = vmatpush.msra.mxu0 0.0
        %610 = vmatpush.msra.mxu0 0.0
        %611 = vmatpush.msra.mxu0 0.0
        %612 = vmatpush.msra.mxu0 0.0
        %613 = vmatpush.msra.mxu0 0.0
        %614 = vmatpush.msra.mxu0 0.0
        %615 = vmatpush.msra.mxu0 0.0
        %616 = vmatpush.msra.mxu0 0.0
        %617 = vmatpush.msra.mxu0 0.0
        %618 = vmatpush.msra.mxu0 0.0
        %619 = vmatpush.msra.mxu0 0.0
        %620 = vmatpush.msra.mxu0 %v538
        %621 = vmatmul.f32.gmra.mxu0 %v594
        %v622 = vpop.f32.mrf.mxu0
        %v623 = vadd.f32 0.0, %v622
        %624 = vmatmul.f32.gmra.mxu0 %v597
        %v625 = vpop.f32.mrf.mxu0
        %v626 = vadd.f32 0.0, %v625
        %627 = vmatmul.f32.gmra.mxu0 %v600
        %v628 = vpop.f32.mrf.mxu0
        %v629 = vadd.f32 0.0, %v628
        %630 = vmatmul.f32.gmra.mxu0 %v603
        %v631 = vpop.f32.mrf.mxu0
        %v632 = vadd.f32 0.0, %v631
        %633 = vdwg.mxu0
        %v634 = vsel %vm439, %v623, -inf
        %635 = vmax.xlane.f32.xlu0 %v634
        %v636 = vpop.xlane.xlu0 %635
        %v637 = vsel %vm439, %v626, -inf
        %638 = vmax.xlane.f32.xlu0 %v637
        %v639 = vpop.xlane.xlu0 %638
        %v640 = vsel %vm439, %v629, -inf
        %641 = vmax.xlane.f32.xlu0 %v640
        %v642 = vpop.xlane.xlu0 %641
        %v643 = vsel %vm439, %v632, -inf
        %644 = vmax.xlane.f32.xlu0 %v643
        %v645 = vpop.xlane.xlu0 %644
        %v646 = vsub.f32 %v623, %v636
        %v647 = vsub.f32 %v626, %v639
        %v648 = vsub.f32 %v629, %v642
        %v649 = vsub.f32 %v632, %v645
        %v650 = vmul.f32 %v646, 1.442695
        %v651 = vpow.pop %v650
        %v652 = vmul.f32 %v647, 1.442695
        %v653 = vpow.pop %v652
        %v654 = vmul.f32 %v648, 1.442695
        %v655 = vpow.pop %v654
        %v656 = vmul.f32 %v649, 1.442695
        %v657 = vpow.pop %v656
        %v658 = vsel %vm439, %v651, 0.0
        %659 = vadd.xlane.f32.xlu0 %v658
        %v660 = vpop.xlane.xlu0 %659
        %v661 = vsel %vm439, %v653, 0.0
        %662 = vadd.xlane.f32.xlu0 %v661
        %v663 = vpop.xlane.xlu0 %662
        %v664 = vsel %vm439, %v655, 0.0
        %665 = vadd.xlane.f32.xlu0 %v664
        %v666 = vpop.xlane.xlu0 %665
        %v667 = vsel %vm439, %v657, 0.0
        %668 = vadd.xlane.f32.xlu0 %v667
        %v669 = vpop.xlane.xlu0 %668
        %v670 = vrcp.pop %v660
        %v671 = vrcp.pop %v663
        %v672 = vrcp.pop %v666
        %v673 = vrcp.pop %v669
        %v674 = vmul.f32 %v651, %v670
        %v675 = vmul.f32 %v653, %v671
        %v676 = vmul.f32 %v655, %v672
        %v677 = vmul.f32 %v657, %v673
        %v679 = vsel %vm439, %v674, 0
        %v682 = vsel %vm439, %v675, 0
        %v685 = vsel %vm439, %v676, 0
        %v688 = vsel %vm439, %v677, 0
        %v691 = vsel %vm439, %v558, 0
        %693 = vmatpush.xpose.msra.mxu0 0.0
        %694 = vmatpush.xpose.msra.mxu0 0.0
        %695 = vmatpush.xpose.msra.mxu0 0.0
        %696 = vmatpush.xpose.msra.mxu0 0.0
        %697 = vmatpush.xpose.msra.mxu0 0.0
        %698 = vmatpush.xpose.msra.mxu0 0.0
        %699 = vmatpush.xpose.msra.mxu0 0.0
        %700 = vmatpush.xpose.msra.mxu0 0.0
        %701 = vmatpush.xpose.msra.mxu0 0.0
        %702 = vmatpush.xpose.msra.mxu0 0.0
        %703 = vmatpush.xpose.msra.mxu0 0.0
        %704 = vmatpush.xpose.msra.mxu0 0.0
        %705 = vmatpush.xpose.msra.mxu0 0.0
        %706 = vmatpush.xpose.msra.mxu0 0.0
        %707 = vmatpush.xpose.msra.mxu0 0.0
        %708 = vmatpush.xpose.msra.mxu0 %v691
        %709 = vmatmul.f32.gmra.mxu0 %v679
        %v710 = vpop.f32.mrf.mxu0
        %v711 = vadd.f32 0.0, %v710
        %712 = vmatmul.f32.gmra.mxu0 %v682
        %v713 = vpop.f32.mrf.mxu0
        %v714 = vadd.f32 0.0, %v713
        %715 = vmatmul.f32.gmra.mxu0 %v685
        %v716 = vpop.f32.mrf.mxu0
        %v717 = vadd.f32 0.0, %v716
        %718 = vmatmul.f32.gmra.mxu0 %v688
        %v719 = vpop.f32.mrf.mxu0
        %v720 = vadd.f32 0.0, %v719
        %721 = vdwg.mxu0
        %v722 = vld [vmem:[%s5] sm:$0xff]
        %v723 = vld [vmem:[%s5 + $0x8] sm:$0xff]
        %v725 = vsel %vm592, %v714, 0
        %727 = vmatpush.msra.mxu0 0.0
        %728 = vmatpush.msra.mxu0 0.0
        %729 = vmatpush.msra.mxu0 0.0
        %730 = vmatpush.msra.mxu0 0.0
        %731 = vmatpush.msra.mxu0 0.0
        %732 = vmatpush.msra.mxu0 0.0
        %733 = vmatpush.msra.mxu0 0.0
        %734 = vmatpush.msra.mxu0 0.0
        %735 = vmatpush.msra.mxu0 0.0
        %736 = vmatpush.msra.mxu0 0.0
        %737 = vmatpush.msra.mxu0 0.0
        %738 = vmatpush.msra.mxu0 0.0
        %739 = vmatpush.msra.mxu0 0.0
        %740 = vmatpush.msra.mxu0 0.0
        %741 = vmatpush.msra.mxu0 0.0
        %742 = vmatpush.msra.mxu0 %v723
        %743 = vmatmul.f32.gmra.mxu0 %v725
        %v744 = vpop.f32.mrf.mxu0
        %v745 = vadd.f32 0.0, %v744
        %746 = vdwg.mxu0
        %v748 = vsel %vm592, %v711, 0
        %750 = vmatpush.msra.mxu0 0.0
        %751 = vmatpush.msra.mxu0 0.0
        %752 = vmatpush.msra.mxu0 0.0
        %753 = vmatpush.msra.mxu0 0.0
        %754 = vmatpush.msra.mxu0 0.0
        %755 = vmatpush.msra.mxu0 0.0
        %756 = vmatpush.msra.mxu0 0.0
        %757 = vmatpush.msra.mxu0 0.0
        %758 = vmatpush.msra.mxu0 0.0
        %759 = vmatpush.msra.mxu0 0.0
        %760 = vmatpush.msra.mxu0 0.0
        %761 = vmatpush.msra.mxu0 0.0
        %762 = vmatpush.msra.mxu0 0.0
        %763 = vmatpush.msra.mxu0 0.0
        %764 = vmatpush.msra.mxu0 0.0
        %765 = vmatpush.msra.mxu0 %v722
        %766 = vmatmul.f32.gmra.mxu0 %v748
        %v767 = vpop.f32.mrf.mxu0
        %v768 = vadd.f32 %v745, %v767
        %769 = vdwg.mxu0
        %v770 = vld [vmem:[%s5 + $0x10] sm:$0xff]
        %v772 = vsel %vm592, %v717, 0
        %774 = vmatpush.msra.mxu0 0.0
        %775 = vmatpush.msra.mxu0 0.0
        %776 = vmatpush.msra.mxu0 0.0
        %777 = vmatpush.msra.mxu0 0.0
        %778 = vmatpush.msra.mxu0 0.0
        %779 = vmatpush.msra.mxu0 0.0
        %780 = vmatpush.msra.mxu0 0.0
        %781 = vmatpush.msra.mxu0 0.0
        %782 = vmatpush.msra.mxu0 0.0
        %783 = vmatpush.msra.mxu0 0.0
        %784 = vmatpush.msra.mxu0 0.0
        %785 = vmatpush.msra.mxu0 0.0
        %786 = vmatpush.msra.mxu0 0.0
        %787 = vmatpush.msra.mxu0 0.0
        %788 = vmatpush.msra.mxu0 0.0
        %789 = vmatpush.msra.mxu0 %v770
        %790 = vmatmul.f32.gmra.mxu0 %v772
        %v791 = vpop.f32.mrf.mxu0
        %v792 = vadd.f32 0.0, %v791
        %793 = vdwg.mxu0
        %v794 = vadd.f32 %v768, %v792
        %v795 = vld [vmem:[%s5 + $0x18] sm:$0xff]
        %v797 = vsel %vm592, %v720, 0
        %799 = vmatpush.msra.mxu0 0.0
        %800 = vmatpush.msra.mxu0 0.0
        %801 = vmatpush.msra.mxu0 0.0
        %802 = vmatpush.msra.mxu0 0.0
        %803 = vmatpush.msra.mxu0 0.0
        %804 = vmatpush.msra.mxu0 0.0
        %805 = vmatpush.msra.mxu0 0.0
        %806 = vmatpush.msra.mxu0 0.0
        %807 = vmatpush.msra.mxu0 0.0
        %808 = vmatpush.msra.mxu0 0.0
        %809 = vmatpush.msra.mxu0 0.0
        %810 = vmatpush.msra.mxu0 0.0
        %811 = vmatpush.msra.mxu0 0.0
        %812 = vmatpush.msra.mxu0 0.0
        %813 = vmatpush.msra.mxu0 0.0
        %814 = vmatpush.msra.mxu0 %v795
        %815 = vmatmul.f32.gmra.mxu0 %v797
        %v816 = vpop.f32.mrf.mxu0
        %v817 = vadd.f32 0.0, %v816
        %818 = vdwg.mxu0
        %v819 = vadd.f32 %v794, %v817
        %821 = vrot.lane.b32.xlu0 %v518, 96
        %v822 = vpop.permute.xlu0 %821
        %824 = vxpose.xlu0.b32.start [1/16] %v822, 128
        %825 = vxpose.xlu0.b32.cont [2/16] 0.0, 128
        %826 = vxpose.xlu0.b32.cont [3/16] 0.0, 128
        %827 = vxpose.xlu0.b32.cont [4/16] 0.0, 128
        %828 = vxpose.xlu0.b32.cont [5/16] 0.0, 128
        %829 = vxpose.xlu0.b32.cont [6/16] 0.0, 128
        %830 = vxpose.xlu0.b32.cont [7/16] 0.0, 128
        %831 = vxpose.xlu0.b32.cont [8/16] 0.0, 128
        %832 = vxpose.xlu0.b32.cont [9/16] 0.0, 128
        %833 = vxpose.xlu0.b32.cont [10/16] 0.0, 128
        %834 = vxpose.xlu0.b32.cont [11/16] 0.0, 128
        %835 = vxpose.xlu0.b32.cont [12/16] 0.0, 128
        %836 = vxpose.xlu0.b32.cont [13/16] 0.0, 128
        %837 = vxpose.xlu0.b32.cont [14/16] 0.0, 128
        %838 = vxpose.xlu0.b32.cont [15/16] 0.0, 128
        %839 = vxpose.xlu0.b32.end [16/16] 0.0, 128
        %v840 = vpop.trf.xlu0
        %v841 = vpop.trf.xlu0
        %v842 = vpop.trf.xlu0
        %v843 = vpop.trf.xlu0
        %v844 = vpop.trf.xlu0
        %v845 = vpop.trf.xlu0
        %v846 = vpop.trf.xlu0
        %v847 = vpop.trf.xlu0
        %v848 = vpop.trf.xlu0
        %v849 = vpop.trf.xlu0
        %v850 = vpop.trf.xlu0
        %v851 = vpop.trf.xlu0
        %v852 = vpop.trf.xlu0
        %v853 = vpop.trf.xlu0
        %v854 = vpop.trf.xlu0
        %v855 = vpop.trf.xlu0
        %857 = vrot.lane.b32.xlu0 %v538, 96
        %v858 = vpop.permute.xlu0 %857
        %v861 = vsel %vm592, %v840, 0
        %v864 = vsel %vm592, %v841, 0
        %v867 = vsel %vm592, %v842, 0
        %v870 = vsel %vm592, %v843, 0
        %872 = vmatpush.msra.mxu0 0.0
        %873 = vmatpush.msra.mxu0 0.0
        %874 = vmatpush.msra.mxu0 0.0
        %875 = vmatpush.msra.mxu0 0.0
        %876 = vmatpush.msra.mxu0 0.0
        %877 = vmatpush.msra.mxu0 0.0
        %878 = vmatpush.msra.mxu0 0.0
        %879 = vmatpush.msra.mxu0 0.0
        %880 = vmatpush.msra.mxu0 0.0
        %881 = vmatpush.msra.mxu0 0.0
        %882 = vmatpush.msra.mxu0 0.0
        %883 = vmatpush.msra.mxu0 0.0
        %884 = vmatpush.msra.mxu0 0.0
        %885 = vmatpush.msra.mxu0 0.0
        %886 = vmatpush.msra.mxu0 0.0
        %887 = vmatpush.msra.mxu0 %v858
        %888 = vmatmul.f32.gmra.mxu0 %v861
        %v889 = vpop.f32.mrf.mxu0
        %v890 = vadd.f32 0.0, %v889
        %891 = vmatmul.f32.gmra.mxu0 %v864
        %v892 = vpop.f32.mrf.mxu0
        %v893 = vadd.f32 0.0, %v892
        %894 = vmatmul.f32.gmra.mxu0 %v867
        %v895 = vpop.f32.mrf.mxu0
        %v896 = vadd.f32 0.0, %v895
        %897 = vmatmul.f32.gmra.mxu0 %v870
        %v898 = vpop.f32.mrf.mxu0
        %v899 = vadd.f32 0.0, %v898
        %900 = vdwg.mxu0
        %v901 = vsel %vm439, %v890, -inf
        %902 = vmax.xlane.f32.xlu0 %v901
        %v903 = vpop.xlane.xlu0 %902
        %v904 = vsel %vm439, %v893, -inf
        %905 = vmax.xlane.f32.xlu0 %v904
        %v906 = vpop.xlane.xlu0 %905
        %v907 = vsel %vm439, %v896, -inf
        %908 = vmax.xlane.f32.xlu0 %v907
        %v909 = vpop.xlane.xlu0 %908
        %v910 = vsel %vm439, %v899, -inf
        %911 = vmax.xlane.f32.xlu0 %v910
        %v912 = vpop.xlane.xlu0 %911
        %v913 = vsub.f32 %v890, %v903
        %v914 = vsub.f32 %v893, %v906
        %v915 = vsub.f32 %v896, %v909
        %v916 = vsub.f32 %v899, %v912
        %v917 = vmul.f32 %v913, 1.442695
        %v918 = vpow.pop %v917
        %v919 = vmul.f32 %v914, 1.442695
        %v920 = vpow.pop %v919
        %v921 = vmul.f32 %v915, 1.442695
        %v922 = vpow.pop %v921
        %v923 = vmul.f32 %v916, 1.442695
        %v924 = vpow.pop %v923
        %v925 = vsel %vm439, %v918, 0.0
        %926 = vadd.xlane.f32.xlu0 %v925
        %v927 = vpop.xlane.xlu0 %926
        %v928 = vsel %vm439, %v920, 0.0
        %929 = vadd.xlane.f32.xlu0 %v928
        %v930 = vpop.xlane.xlu0 %929
        %v931 = vsel %vm439, %v922, 0.0
        %932 = vadd.xlane.f32.xlu0 %v931
        %v933 = vpop.xlane.xlu0 %932
        %v934 = vsel %vm439, %v924, 0.0
        %935 = vadd.xlane.f32.xlu0 %v934
        %v936 = vpop.xlane.xlu0 %935
        %v937 = vrcp.pop %v927
        %v938 = vrcp.pop %v930
        %v939 = vrcp.pop %v933
        %v940 = vrcp.pop %v936
        %v941 = vmul.f32 %v918, %v937
        %v942 = vmul.f32 %v920, %v938
        %v943 = vmul.f32 %v922, %v939
        %v944 = vmul.f32 %v924, %v940
        %945 = vrot.lane.b32.xlu0 %v558, 96
        %v946 = vpop.permute.xlu0 %945
        %v948 = vsel %vm439, %v941, 0
        %v951 = vsel %vm439, %v942, 0
        %v954 = vsel %vm439, %v943, 0
        %v957 = vsel %vm439, %v944, 0
        %v959 = vsel %vm439, %v946, 0
        %961 = vmatpush.xpose.msra.mxu0 0.0
        %962 = vmatpush.xpose.msra.mxu0 0.0
        %963 = vmatpush.xpose.msra.mxu0 0.0
        %964 = vmatpush.xpose.msra.mxu0 0.0
        %965 = vmatpush.xpose.msra.mxu0 0.0
        %966 = vmatpush.xpose.msra.mxu0 0.0
        %967 = vmatpush.xpose.msra.mxu0 0.0
        %968 = vmatpush.xpose.msra.mxu0 0.0
        %969 = vmatpush.xpose.msra.mxu0 0.0
        %970 = vmatpush.xpose.msra.mxu0 0.0
        %971 = vmatpush.xpose.msra.mxu0 0.0
        %972 = vmatpush.xpose.msra.mxu0 0.0
        %973 = vmatpush.xpose.msra.mxu0 0.0
        %974 = vmatpush.xpose.msra.mxu0 0.0
        %975 = vmatpush.xpose.msra.mxu0 0.0
        %976 = vmatpush.xpose.msra.mxu0 %v959
        %977 = vmatmul.f32.gmra.mxu0 %v948
        %v978 = vpop.f32.mrf.mxu0
        %v979 = vadd.f32 0.0, %v978
        %980 = vmatmul.f32.gmra.mxu0 %v951
        %v981 = vpop.f32.mrf.mxu0
        %v982 = vadd.f32 0.0, %v981
        %983 = vmatmul.f32.gmra.mxu0 %v954
        %v984 = vpop.f32.mrf.mxu0
        %v985 = vadd.f32 0.0, %v984
        %986 = vmatmul.f32.gmra.mxu0 %v957
        %v987 = vpop.f32.mrf.mxu0
        %v988 = vadd.f32 0.0, %v987
        %989 = vdwg.mxu0
        %v990 = vld [vmem:[%s5 + $0x20] sm:$0xff]
        %v992 = vsel %vm592, %v979, 0
        %994 = vmatpush.msra.mxu0 0.0
        %995 = vmatpush.msra.mxu0 0.0
        %996 = vmatpush.msra.mxu0 0.0
        %997 = vmatpush.msra.mxu0 0.0
        %998 = vmatpush.msra.mxu0 0.0
        %999 = vmatpush.msra.mxu0 0.0
        %1000 = vmatpush.msra.mxu0 0.0
        %1001 = vmatpush.msra.mxu0 0.0
        %1002 = vmatpush.msra.mxu0 0.0
        %1003 = vmatpush.msra.mxu0 0.0
        %1004 = vmatpush.msra.mxu0 0.0
        %1005 = vmatpush.msra.mxu0 0.0
        %1006 = vmatpush.msra.mxu0 0.0
        %1007 = vmatpush.msra.mxu0 0.0
        %1008 = vmatpush.msra.mxu0 0.0
        %1009 = vmatpush.msra.mxu0 %v990
        %1010 = vmatmul.f32.gmra.mxu0 %v992
        %v1011 = vpop.f32.mrf.mxu0
        %v1012 = vadd.f32 0.0, %v1011
        %1013 = vdwg.mxu0
        %v1014 = vadd.f32 %v819, %v1012
        %v1015 = vld [vmem:[%s5 + $0x28] sm:$0xff]
        %v1017 = vsel %vm592, %v982, 0
        %1019 = vmatpush.msra.mxu0 0.0
        %1020 = vmatpush.msra.mxu0 0.0
        %1021 = vmatpush.msra.mxu0 0.0
        %1022 = vmatpush.msra.mxu0 0.0
        %1023 = vmatpush.msra.mxu0 0.0
        %1024 = vmatpush.msra.mxu0 0.0
        %1025 = vmatpush.msra.mxu0 0.0
        %1026 = vmatpush.msra.mxu0 0.0
        %1027 = vmatpush.msra.mxu0 0.0
        %1028 = vmatpush.msra.mxu0 0.0
        %1029 = vmatpush.msra.mxu0 0.0
        %1030 = vmatpush.msra.mxu0 0.0
        %1031 = vmatpush.msra.mxu0 0.0
        %1032 = vmatpush.msra.mxu0 0.0
        %1033 = vmatpush.msra.mxu0 0.0
        %1034 = vmatpush.msra.mxu0 %v1015
        %1035 = vmatmul.f32.gmra.mxu0 %v1017
        %v1036 = vpop.f32.mrf.mxu0
        %v1037 = vadd.f32 0.0, %v1036
        %1038 = vdwg.mxu0
        %v1039 = vadd.f32 %v1014, %v1037
        %v1040 = vld [vmem:[%s5 + $0x30] sm:$0xff]
        %v1042 = vsel %vm592, %v985, 0
        %1044 = vmatpush.msra.mxu0 0.0
        %1045 = vmatpush.msra.mxu0 0.0
        %1046 = vmatpush.msra.mxu0 0.0
        %1047 = vmatpush.msra.mxu0 0.0
        %1048 = vmatpush.msra.mxu0 0.0
        %1049 = vmatpush.msra.mxu0 0.0
        %1050 = vmatpush.msra.mxu0 0.0
        %1051 = vmatpush.msra.mxu0 0.0
        %1052 = vmatpush.msra.mxu0 0.0
        %1053 = vmatpush.msra.mxu0 0.0
        %1054 = vmatpush.msra.mxu0 0.0
        %1055 = vmatpush.msra.mxu0 0.0
        %1056 = vmatpush.msra.mxu0 0.0
        %1057 = vmatpush.msra.mxu0 0.0
        %1058 = vmatpush.msra.mxu0 0.0
        %1059 = vmatpush.msra.mxu0 %v1040
        %1060 = vmatmul.f32.gmra.mxu0 %v1042
        %v1061 = vpop.f32.mrf.mxu0
        %v1062 = vadd.f32 0.0, %v1061
        %1063 = vdwg.mxu0
        %v1064 = vadd.f32 %v1039, %v1062
        %v1065 = vld [vmem:[%s5 + $0x38] sm:$0xff]
        %v1067 = vsel %vm592, %v988, 0
        %1069 = vmatpush.msra.mxu0 0.0
        %1070 = vmatpush.msra.mxu0 0.0
        %1071 = vmatpush.msra.mxu0 0.0
        %1072 = vmatpush.msra.mxu0 0.0
        %1073 = vmatpush.msra.mxu0 0.0
        %1074 = vmatpush.msra.mxu0 0.0
        %1075 = vmatpush.msra.mxu0 0.0
        %1076 = vmatpush.msra.mxu0 0.0
        %1077 = vmatpush.msra.mxu0 0.0
        %1078 = vmatpush.msra.mxu0 0.0
        %1079 = vmatpush.msra.mxu0 0.0
        %1080 = vmatpush.msra.mxu0 0.0
        %1081 = vmatpush.msra.mxu0 0.0
        %1082 = vmatpush.msra.mxu0 0.0
        %1083 = vmatpush.msra.mxu0 0.0
        %1084 = vmatpush.msra.mxu0 %v1065
        %1085 = vmatmul.f32.gmra.mxu0 %v1067
        %v1086 = vpop.f32.mrf.mxu0
        %v1087 = vadd.f32 0.0, %v1086
        %1088 = vdwg.mxu0
        %v1089 = vadd.f32 %v1064, %v1087
        %1090 = vrot.lane.b32.xlu0 %v518, 64
        %v1091 = vpop.permute.xlu0 %1090
        %1093 = vxpose.xlu0.b32.start [1/16] %v1091, 128
        %1094 = vxpose.xlu0.b32.cont [2/16] 0.0, 128
        %1095 = vxpose.xlu0.b32.cont [3/16] 0.0, 128
        %1096 = vxpose.xlu0.b32.cont [4/16] 0.0, 128
        %1097 = vxpose.xlu0.b32.cont [5/16] 0.0, 128
        %1098 = vxpose.xlu0.b32.cont [6/16] 0.0, 128
        %1099 = vxpose.xlu0.b32.cont [7/16] 0.0, 128
        %1100 = vxpose.xlu0.b32.cont [8/16] 0.0, 128
        %1101 = vxpose.xlu0.b32.cont [9/16] 0.0, 128
        %1102 = vxpose.xlu0.b32.cont [10/16] 0.0, 128
        %1103 = vxpose.xlu0.b32.cont [11/16] 0.0, 128
        %1104 = vxpose.xlu0.b32.cont [12/16] 0.0, 128
        %1105 = vxpose.xlu0.b32.cont [13/16] 0.0, 128
        %1106 = vxpose.xlu0.b32.cont [14/16] 0.0, 128
        %1107 = vxpose.xlu0.b32.cont [15/16] 0.0, 128
        %1108 = vxpose.xlu0.b32.end [16/16] 0.0, 128
        %v1109 = vpop.trf.xlu0
        %v1110 = vpop.trf.xlu0
        %v1111 = vpop.trf.xlu0
        %v1112 = vpop.trf.xlu0
        %v1113 = vpop.trf.xlu0
        %v1114 = vpop.trf.xlu0
        %v1115 = vpop.trf.xlu0
        %v1116 = vpop.trf.xlu0
        %v1117 = vpop.trf.xlu0
        %v1118 = vpop.trf.xlu0
        %v1119 = vpop.trf.xlu0
        %v1120 = vpop.trf.xlu0
        %v1121 = vpop.trf.xlu0
        %v1122 = vpop.trf.xlu0
        %v1123 = vpop.trf.xlu0
        %v1124 = vpop.trf.xlu0
        %1125 = vrot.lane.b32.xlu0 %v538, 64
        %v1126 = vpop.permute.xlu0 %1125
        %v1129 = vsel %vm592, %v1109, 0
        %v1132 = vsel %vm592, %v1110, 0
        %v1135 = vsel %vm592, %v1111, 0
        %v1138 = vsel %vm592, %v1112, 0
        %1140 = vmatpush.msra.mxu0 0.0
        %1141 = vmatpush.msra.mxu0 0.0
        %1142 = vmatpush.msra.mxu0 0.0
        %1143 = vmatpush.msra.mxu0 0.0
        %1144 = vmatpush.msra.mxu0 0.0
        %1145 = vmatpush.msra.mxu0 0.0
        %1146 = vmatpush.msra.mxu0 0.0
        %1147 = vmatpush.msra.mxu0 0.0
        %1148 = vmatpush.msra.mxu0 0.0
        %1149 = vmatpush.msra.mxu0 0.0
        %1150 = vmatpush.msra.mxu0 0.0
        %1151 = vmatpush.msra.mxu0 0.0
        %1152 = vmatpush.msra.mxu0 0.0
        %1153 = vmatpush.msra.mxu0 0.0
        %1154 = vmatpush.msra.mxu0 0.0
        %1155 = vmatpush.msra.mxu0 %v1126
        %1156 = vmatmul.f32.gmra.mxu0 %v1129
        %v1157 = vpop.f32.mrf.mxu0
        %v1158 = vadd.f32 0.0, %v1157
        %1159 = vmatmul.f32.gmra.mxu0 %v1132
        %v1160 = vpop.f32.mrf.mxu0
        %v1161 = vadd.f32 0.0, %v1160
        %1162 = vmatmul.f32.gmra.mxu0 %v1135
        %v1163 = vpop.f32.mrf.mxu0
        %v1164 = vadd.f32 0.0, %v1163
        %1165 = vmatmul.f32.gmra.mxu0 %v1138
        %v1166 = vpop.f32.mrf.mxu0
        %v1167 = vadd.f32 0.0, %v1166
        %1168 = vdwg.mxu0
        %v1169 = vsel %vm439, %v1158, -inf
        %1170 = vmax.xlane.f32.xlu0 %v1169
        %v1171 = vpop.xlane.xlu0 %1170
        %v1172 = vsel %vm439, %v1161, -inf
        %1173 = vmax.xlane.f32.xlu0 %v1172
        %v1174 = vpop.xlane.xlu0 %1173
        %v1175 = vsel %vm439, %v1164, -inf
        %1176 = vmax.xlane.f32.xlu0 %v1175
        %v1177 = vpop.xlane.xlu0 %1176
        %v1178 = vsel %vm439, %v1167, -inf
        %1179 = vmax.xlane.f32.xlu0 %v1178
        %v1180 = vpop.xlane.xlu0 %1179
        %v1181 = vsub.f32 %v1158, %v1171
        %v1182 = vsub.f32 %v1161, %v1174
        %v1183 = vsub.f32 %v1164, %v1177
        %v1184 = vsub.f32 %v1167, %v1180
        %v1185 = vmul.f32 %v1181, 1.442695
        %v1186 = vpow.pop %v1185
        %v1187 = vmul.f32 %v1182, 1.442695
        %v1188 = vpow.pop %v1187
        %v1189 = vmul.f32 %v1183, 1.442695
        %v1190 = vpow.pop %v1189
        %v1191 = vmul.f32 %v1184, 1.442695
        %v1192 = vpow.pop %v1191
        %v1193 = vsel %vm439, %v1186, 0.0
        %1194 = vadd.xlane.f32.xlu0 %v1193
        %v1195 = vpop.xlane.xlu0 %1194
        %v1196 = vsel %vm439, %v1188, 0.0
        %1197 = vadd.xlane.f32.xlu0 %v1196
        %v1198 = vpop.xlane.xlu0 %1197
        %v1199 = vsel %vm439, %v1190, 0.0
        %1200 = vadd.xlane.f32.xlu0 %v1199
        %v1201 = vpop.xlane.xlu0 %1200
        %v1202 = vsel %vm439, %v1192, 0.0
        %1203 = vadd.xlane.f32.xlu0 %v1202
        %v1204 = vpop.xlane.xlu0 %1203
        %v1205 = vrcp.pop %v1195
        %v1206 = vrcp.pop %v1198
        %v1207 = vrcp.pop %v1201
        %v1208 = vrcp.pop %v1204
        %v1209 = vmul.f32 %v1186, %v1205
        %v1210 = vmul.f32 %v1188, %v1206
        %v1211 = vmul.f32 %v1190, %v1207
        %v1212 = vmul.f32 %v1192, %v1208
        %1213 = vrot.lane.b32.xlu0 %v558, 64
        %v1214 = vpop.permute.xlu0 %1213
        %v1216 = vsel %vm439, %v1209, 0
        %v1219 = vsel %vm439, %v1210, 0
        %v1222 = vsel %vm439, %v1211, 0
        %v1225 = vsel %vm439, %v1212, 0
        %v1227 = vsel %vm439, %v1214, 0
        %1229 = vmatpush.xpose.msra.mxu0 0.0
        %1230 = vmatpush.xpose.msra.mxu0 0.0
        %1231 = vmatpush.xpose.msra.mxu0 0.0
        %1232 = vmatpush.xpose.msra.mxu0 0.0
        %1233 = vmatpush.xpose.msra.mxu0 0.0
        %1234 = vmatpush.xpose.msra.mxu0 0.0
        %1235 = vmatpush.xpose.msra.mxu0 0.0
        %1236 = vmatpush.xpose.msra.mxu0 0.0
        %1237 = vmatpush.xpose.msra.mxu0 0.0
        %1238 = vmatpush.xpose.msra.mxu0 0.0
        %1239 = vmatpush.xpose.msra.mxu0 0.0
        %1240 = vmatpush.xpose.msra.mxu0 0.0
        %1241 = vmatpush.xpose.msra.mxu0 0.0
        %1242 = vmatpush.xpose.msra.mxu0 0.0
        %1243 = vmatpush.xpose.msra.mxu0 0.0
        %1244 = vmatpush.xpose.msra.mxu0 %v1227
        %1245 = vmatmul.f32.gmra.mxu0 %v1216
        %v1246 = vpop.f32.mrf.mxu0
        %v1247 = vadd.f32 0.0, %v1246
        %1248 = vmatmul.f32.gmra.mxu0 %v1219
        %v1249 = vpop.f32.mrf.mxu0
        %v1250 = vadd.f32 0.0, %v1249
        %1251 = vmatmul.f32.gmra.mxu0 %v1222
        %v1252 = vpop.f32.mrf.mxu0
        %v1253 = vadd.f32 0.0, %v1252
        %1254 = vmatmul.f32.gmra.mxu0 %v1225
        %v1255 = vpop.f32.mrf.mxu0
        %v1256 = vadd.f32 0.0, %v1255
        %1257 = vdwg.mxu0
        %v1258 = vld [vmem:[%s5 + $0x40] sm:$0xff]
        %v1260 = vsel %vm592, %v1247, 0
        %1262 = vmatpush.msra.mxu0 0.0
        %1263 = vmatpush.msra.mxu0 0.0
        %1264 = vmatpush.msra.mxu0 0.0
        %1265 = vmatpush.msra.mxu0 0.0
        %1266 = vmatpush.msra.mxu0 0.0
        %1267 = vmatpush.msra.mxu0 0.0
        %1268 = vmatpush.msra.mxu0 0.0
        %1269 = vmatpush.msra.mxu0 0.0
        %1270 = vmatpush.msra.mxu0 0.0
        %1271 = vmatpush.msra.mxu0 0.0
        %1272 = vmatpush.msra.mxu0 0.0
        %1273 = vmatpush.msra.mxu0 0.0
        %1274 = vmatpush.msra.mxu0 0.0
        %1275 = vmatpush.msra.mxu0 0.0
        %1276 = vmatpush.msra.mxu0 0.0
        %1277 = vmatpush.msra.mxu0 %v1258
        %1278 = vmatmul.f32.gmra.mxu0 %v1260
        %v1279 = vpop.f32.mrf.mxu0
        %v1280 = vadd.f32 0.0, %v1279
        %1281 = vdwg.mxu0
        %v1282 = vadd.f32 %v1089, %v1280
        %v1283 = vld [vmem:[%s5 + $0x48] sm:$0xff]
        %v1285 = vsel %vm592, %v1250, 0
        %1287 = vmatpush.msra.mxu0 0.0
        %1288 = vmatpush.msra.mxu0 0.0
        %1289 = vmatpush.msra.mxu0 0.0
        %1290 = vmatpush.msra.mxu0 0.0
        %1291 = vmatpush.msra.mxu0 0.0
        %1292 = vmatpush.msra.mxu0 0.0
        %1293 = vmatpush.msra.mxu0 0.0
        %1294 = vmatpush.msra.mxu0 0.0
        %1295 = vmatpush.msra.mxu0 0.0
        %1296 = vmatpush.msra.mxu0 0.0
        %1297 = vmatpush.msra.mxu0 0.0
        %1298 = vmatpush.msra.mxu0 0.0
        %1299 = vmatpush.msra.mxu0 0.0
        %1300 = vmatpush.msra.mxu0 0.0
        %1301 = vmatpush.msra.mxu0 0.0
        %1302 = vmatpush.msra.mxu0 %v1283
        %1303 = vmatmul.f32.gmra.mxu0 %v1285
        %v1304 = vpop.f32.mrf.mxu0
        %v1305 = vadd.f32 0.0, %v1304
        %1306 = vdwg.mxu0
        %v1307 = vadd.f32 %v1282, %v1305
        %v1308 = vld [vmem:[%s5 + $0x50] sm:$0xff]
        %v1310 = vsel %vm592, %v1253, 0
        %1312 = vmatpush.msra.mxu0 0.0
        %1313 = vmatpush.msra.mxu0 0.0
        %1314 = vmatpush.msra.mxu0 0.0
        %1315 = vmatpush.msra.mxu0 0.0
        %1316 = vmatpush.msra.mxu0 0.0
        %1317 = vmatpush.msra.mxu0 0.0
        %1318 = vmatpush.msra.mxu0 0.0
        %1319 = vmatpush.msra.mxu0 0.0
        %1320 = vmatpush.msra.mxu0 0.0
        %1321 = vmatpush.msra.mxu0 0.0
        %1322 = vmatpush.msra.mxu0 0.0
        %1323 = vmatpush.msra.mxu0 0.0
        %1324 = vmatpush.msra.mxu0 0.0
        %1325 = vmatpush.msra.mxu0 0.0
        %1326 = vmatpush.msra.mxu0 0.0
        %1327 = vmatpush.msra.mxu0 %v1308
        %1328 = vmatmul.f32.gmra.mxu0 %v1310
        %v1329 = vpop.f32.mrf.mxu0
        %v1330 = vadd.f32 0.0, %v1329
        %1331 = vdwg.mxu0
        %v1332 = vadd.f32 %v1307, %v1330
        %v1333 = vld [vmem:[%s5 + $0x58] sm:$0xff]
        %v1335 = vsel %vm592, %v1256, 0
        %1337 = vmatpush.msra.mxu0 0.0
        %1338 = vmatpush.msra.mxu0 0.0
        %1339 = vmatpush.msra.mxu0 0.0
        %1340 = vmatpush.msra.mxu0 0.0
        %1341 = vmatpush.msra.mxu0 0.0
        %1342 = vmatpush.msra.mxu0 0.0
        %1343 = vmatpush.msra.mxu0 0.0
        %1344 = vmatpush.msra.mxu0 0.0
        %1345 = vmatpush.msra.mxu0 0.0
        %1346 = vmatpush.msra.mxu0 0.0
        %1347 = vmatpush.msra.mxu0 0.0
        %1348 = vmatpush.msra.mxu0 0.0
        %1349 = vmatpush.msra.mxu0 0.0
        %1350 = vmatpush.msra.mxu0 0.0
        %1351 = vmatpush.msra.mxu0 0.0
        %1352 = vmatpush.msra.mxu0 %v1333
        %1353 = vmatmul.f32.gmra.mxu0 %v1335
        %v1354 = vpop.f32.mrf.mxu0
        %v1355 = vadd.f32 0.0, %v1354
        %1356 = vdwg.mxu0
        %v1357 = vadd.f32 %v1332, %v1355
        %1358 = vrot.lane.b32.xlu0 %v518, 32
        %v1359 = vpop.permute.xlu0 %1358
        %1361 = vxpose.xlu0.b32.start [1/16] %v1359, 128
        %1362 = vxpose.xlu0.b32.cont [2/16] 0.0, 128
        %1363 = vxpose.xlu0.b32.cont [3/16] 0.0, 128
        %1364 = vxpose.xlu0.b32.cont [4/16] 0.0, 128
        %1365 = vxpose.xlu0.b32.cont [5/16] 0.0, 128
        %1366 = vxpose.xlu0.b32.cont [6/16] 0.0, 128
        %1367 = vxpose.xlu0.b32.cont [7/16] 0.0, 128
        %1368 = vxpose.xlu0.b32.cont [8/16] 0.0, 128
        %1369 = vxpose.xlu0.b32.cont [9/16] 0.0, 128
        %1370 = vxpose.xlu0.b32.cont [10/16] 0.0, 128
        %1371 = vxpose.xlu0.b32.cont [11/16] 0.0, 128
        %1372 = vxpose.xlu0.b32.cont [12/16] 0.0, 128
        %1373 = vxpose.xlu0.b32.cont [13/16] 0.0, 128
        %1374 = vxpose.xlu0.b32.cont [14/16] 0.0, 128
        %1375 = vxpose.xlu0.b32.cont [15/16] 0.0, 128
        %1376 = vxpose.xlu0.b32.end [16/16] 0.0, 128
        %v1377 = vpop.trf.xlu0
        %v1378 = vpop.trf.xlu0
        %v1379 = vpop.trf.xlu0
        %v1380 = vpop.trf.xlu0
        %v1381 = vpop.trf.xlu0
        %v1382 = vpop.trf.xlu0
        %v1383 = vpop.trf.xlu0
        %v1384 = vpop.trf.xlu0
        %v1385 = vpop.trf.xlu0
        %v1386 = vpop.trf.xlu0
        %v1387 = vpop.trf.xlu0
        %v1388 = vpop.trf.xlu0
        %v1389 = vpop.trf.xlu0
        %v1390 = vpop.trf.xlu0
        %v1391 = vpop.trf.xlu0
        %v1392 = vpop.trf.xlu0
        %1393 = vrot.lane.b32.xlu0 %v538, 32
        %v1394 = vpop.permute.xlu0 %1393
        %v1397 = vsel %vm592, %v1377, 0
        %v1400 = vsel %vm592, %v1378, 0
        %v1403 = vsel %vm592, %v1379, 0
        %v1406 = vsel %vm592, %v1380, 0
        %1408 = vmatpush.msra.mxu0 0.0
        %1409 = vmatpush.msra.mxu0 0.0
        %1410 = vmatpush.msra.mxu0 0.0
        %1411 = vmatpush.msra.mxu0 0.0
        %1412 = vmatpush.msra.mxu0 0.0
        %1413 = vmatpush.msra.mxu0 0.0
        %1414 = vmatpush.msra.mxu0 0.0
        %1415 = vmatpush.msra.mxu0 0.0
        %1416 = vmatpush.msra.mxu0 0.0
        %1417 = vmatpush.msra.mxu0 0.0
        %1418 = vmatpush.msra.mxu0 0.0
        %1419 = vmatpush.msra.mxu0 0.0
        %1420 = vmatpush.msra.mxu0 0.0
        %1421 = vmatpush.msra.mxu0 0.0
        %1422 = vmatpush.msra.mxu0 0.0
        %1423 = vmatpush.msra.mxu0 %v1394
        %1424 = vmatmul.f32.gmra.mxu0 %v1397
        %v1425 = vpop.f32.mrf.mxu0
        %v1426 = vadd.f32 0.0, %v1425
        %1427 = vmatmul.f32.gmra.mxu0 %v1400
        %v1428 = vpop.f32.mrf.mxu0
        %v1429 = vadd.f32 0.0, %v1428
        %1430 = vmatmul.f32.gmra.mxu0 %v1403
        %v1431 = vpop.f32.mrf.mxu0
        %v1432 = vadd.f32 0.0, %v1431
        %1433 = vmatmul.f32.gmra.mxu0 %v1406
        %v1434 = vpop.f32.mrf.mxu0
        %v1435 = vadd.f32 0.0, %v1434
        %1436 = vdwg.mxu0
        %v1437 = vsel %vm439, %v1426, -inf
        %1438 = vmax.xlane.f32.xlu0 %v1437
        %v1439 = vpop.xlane.xlu0 %1438
        %v1440 = vsel %vm439, %v1429, -inf
        %1441 = vmax.xlane.f32.xlu0 %v1440
        %v1442 = vpop.xlane.xlu0 %1441
        %v1443 = vsel %vm439, %v1432, -inf
        %1444 = vmax.xlane.f32.xlu0 %v1443
        %v1445 = vpop.xlane.xlu0 %1444
        %v1446 = vsel %vm439, %v1435, -inf
        %1447 = vmax.xlane.f32.xlu0 %v1446
        %v1448 = vpop.xlane.xlu0 %1447
        %v1449 = vsub.f32 %v1426, %v1439
        %v1450 = vsub.f32 %v1429, %v1442
        %v1451 = vsub.f32 %v1432, %v1445
        %v1452 = vsub.f32 %v1435, %v1448
        %v1453 = vmul.f32 %v1449, 1.442695
        %v1454 = vpow.pop %v1453
        %v1455 = vmul.f32 %v1450, 1.442695
        %v1456 = vpow.pop %v1455
        %v1457 = vmul.f32 %v1451, 1.442695
        %v1458 = vpow.pop %v1457
        %v1459 = vmul.f32 %v1452, 1.442695
        %v1460 = vpow.pop %v1459
        %v1461 = vsel %vm439, %v1454, 0.0
        %1462 = vadd.xlane.f32.xlu0 %v1461
        %v1463 = vpop.xlane.xlu0 %1462
        %v1464 = vsel %vm439, %v1456, 0.0
        %1465 = vadd.xlane.f32.xlu0 %v1464
        %v1466 = vpop.xlane.xlu0 %1465
        %v1467 = vsel %vm439, %v1458, 0.0
        %1468 = vadd.xlane.f32.xlu0 %v1467
        %v1469 = vpop.xlane.xlu0 %1468
        %v1470 = vsel %vm439, %v1460, 0.0
        %1471 = vadd.xlane.f32.xlu0 %v1470
        %v1472 = vpop.xlane.xlu0 %1471
        %v1473 = vrcp.pop %v1463
        %v1474 = vrcp.pop %v1466
        %v1475 = vrcp.pop %v1469
        %v1476 = vrcp.pop %v1472
        %v1477 = vmul.f32 %v1454, %v1473
        %v1478 = vmul.f32 %v1456, %v1474
        %v1479 = vmul.f32 %v1458, %v1475
        %v1480 = vmul.f32 %v1460, %v1476
        %1481 = vrot.lane.b32.xlu0 %v558, 32
        %v1482 = vpop.permute.xlu0 %1481
        %v1484 = vsel %vm439, %v1477, 0
        %v1487 = vsel %vm439, %v1478, 0
        %v1490 = vsel %vm439, %v1479, 0
        %v1493 = vsel %vm439, %v1480, 0
        %v1495 = vsel %vm439, %v1482, 0
        %1497 = vmatpush.xpose.msra.mxu0 0.0
        %1498 = vmatpush.xpose.msra.mxu0 0.0
        %1499 = vmatpush.xpose.msra.mxu0 0.0
        %1500 = vmatpush.xpose.msra.mxu0 0.0
        %1501 = vmatpush.xpose.msra.mxu0 0.0
        %1502 = vmatpush.xpose.msra.mxu0 0.0
        %1503 = vmatpush.xpose.msra.mxu0 0.0
        %1504 = vmatpush.xpose.msra.mxu0 0.0
        %1505 = vmatpush.xpose.msra.mxu0 0.0
        %1506 = vmatpush.xpose.msra.mxu0 0.0
        %1507 = vmatpush.xpose.msra.mxu0 0.0
        %1508 = vmatpush.xpose.msra.mxu0 0.0
        %1509 = vmatpush.xpose.msra.mxu0 0.0
        %1510 = vmatpush.xpose.msra.mxu0 0.0
        %1511 = vmatpush.xpose.msra.mxu0 0.0
        %1512 = vmatpush.xpose.msra.mxu0 %v1495
        %1513 = vmatmul.f32.gmra.mxu0 %v1484
        %v1514 = vpop.f32.mrf.mxu0
        %v1515 = vadd.f32 0.0, %v1514
        %1516 = vmatmul.f32.gmra.mxu0 %v1487
        %v1517 = vpop.f32.mrf.mxu0
        %v1518 = vadd.f32 0.0, %v1517
        %1519 = vmatmul.f32.gmra.mxu0 %v1490
        %v1520 = vpop.f32.mrf.mxu0
        %v1521 = vadd.f32 0.0, %v1520
        %1522 = vmatmul.f32.gmra.mxu0 %v1493
        %v1523 = vpop.f32.mrf.mxu0
        %v1524 = vadd.f32 0.0, %v1523
        %1525 = vdwg.mxu0
        %v1526 = vld [vmem:[%s5 + $0x60] sm:$0xff]
        %v1528 = vsel %vm592, %v1515, 0
        %1530 = vmatpush.msra.mxu0 0.0
        %1531 = vmatpush.msra.mxu0 0.0
        %1532 = vmatpush.msra.mxu0 0.0
        %1533 = vmatpush.msra.mxu0 0.0
        %1534 = vmatpush.msra.mxu0 0.0
        %1535 = vmatpush.msra.mxu0 0.0
        %1536 = vmatpush.msra.mxu0 0.0
        %1537 = vmatpush.msra.mxu0 0.0
        %1538 = vmatpush.msra.mxu0 0.0
        %1539 = vmatpush.msra.mxu0 0.0
        %1540 = vmatpush.msra.mxu0 0.0
        %1541 = vmatpush.msra.mxu0 0.0
        %1542 = vmatpush.msra.mxu0 0.0
        %1543 = vmatpush.msra.mxu0 0.0
        %1544 = vmatpush.msra.mxu0 0.0
        %1545 = vmatpush.msra.mxu0 %v1526
        %1546 = vmatmul.f32.gmra.mxu0 %v1528
        %v1547 = vpop.f32.mrf.mxu0
        %v1548 = vadd.f32 0.0, %v1547
        %1549 = vdwg.mxu0
        %v1550 = vadd.f32 %v1357, %v1548
        %v1551 = vld [vmem:[%s5 + $0x68] sm:$0xff]
        %v1553 = vsel %vm592, %v1518, 0
        %1555 = vmatpush.msra.mxu0 0.0
        %1556 = vmatpush.msra.mxu0 0.0
        %1557 = vmatpush.msra.mxu0 0.0
        %1558 = vmatpush.msra.mxu0 0.0
        %1559 = vmatpush.msra.mxu0 0.0
        %1560 = vmatpush.msra.mxu0 0.0
        %1561 = vmatpush.msra.mxu0 0.0
        %1562 = vmatpush.msra.mxu0 0.0
        %1563 = vmatpush.msra.mxu0 0.0
        %1564 = vmatpush.msra.mxu0 0.0
        %1565 = vmatpush.msra.mxu0 0.0
        %1566 = vmatpush.msra.mxu0 0.0
        %1567 = vmatpush.msra.mxu0 0.0
        %1568 = vmatpush.msra.mxu0 0.0
        %1569 = vmatpush.msra.mxu0 0.0
        %1570 = vmatpush.msra.mxu0 %v1551
        %1571 = vmatmul.f32.gmra.mxu0 %v1553
        %v1572 = vpop.f32.mrf.mxu0
        %v1573 = vadd.f32 0.0, %v1572
        %1574 = vdwg.mxu0
        %v1575 = vadd.f32 %v1550, %v1573
        %v1576 = vld [vmem:[%s5 + $0x70] sm:$0xff]
        %v1578 = vsel %vm592, %v1521, 0
        %1580 = vmatpush.msra.mxu0 0.0
        %1581 = vmatpush.msra.mxu0 0.0
        %1582 = vmatpush.msra.mxu0 0.0
        %1583 = vmatpush.msra.mxu0 0.0
        %1584 = vmatpush.msra.mxu0 0.0
        %1585 = vmatpush.msra.mxu0 0.0
        %1586 = vmatpush.msra.mxu0 0.0
        %1587 = vmatpush.msra.mxu0 0.0
        %1588 = vmatpush.msra.mxu0 0.0
        %1589 = vmatpush.msra.mxu0 0.0
        %1590 = vmatpush.msra.mxu0 0.0
        %1591 = vmatpush.msra.mxu0 0.0
        %1592 = vmatpush.msra.mxu0 0.0
        %1593 = vmatpush.msra.mxu0 0.0
        %1594 = vmatpush.msra.mxu0 0.0
        %1595 = vmatpush.msra.mxu0 %v1576
        %1596 = vmatmul.f32.gmra.mxu0 %v1578
        %v1597 = vpop.f32.mrf.mxu0
        %v1598 = vadd.f32 0.0, %v1597
        %1599 = vdwg.mxu0
        %v1600 = vadd.f32 %v1575, %v1598
        %v1601 = vld [vmem:[%s5 + $0x78] sm:$0xff]
        %v1603 = vsel %vm592, %v1524, 0
        %1605 = vmatpush.msra.mxu0 0.0
        %1606 = vmatpush.msra.mxu0 0.0
        %1607 = vmatpush.msra.mxu0 0.0
        %1608 = vmatpush.msra.mxu0 0.0
        %1609 = vmatpush.msra.mxu0 0.0
        %1610 = vmatpush.msra.mxu0 0.0
        %1611 = vmatpush.msra.mxu0 0.0
        %1612 = vmatpush.msra.mxu0 0.0
        %1613 = vmatpush.msra.mxu0 0.0
        %1614 = vmatpush.msra.mxu0 0.0
        %1615 = vmatpush.msra.mxu0 0.0
        %1616 = vmatpush.msra.mxu0 0.0
        %1617 = vmatpush.msra.mxu0 0.0
        %1618 = vmatpush.msra.mxu0 0.0
        %1619 = vmatpush.msra.mxu0 0.0
        %1620 = vmatpush.msra.mxu0 %v1601
        %1621 = vmatmul.f32.gmra.mxu0 %v1603
        %v1622 = vpop.f32.mrf.mxu0
        %v1623 = vadd.f32 0.0, %v1622
        %1624 = vdwg.mxu0
        %v1625 = vadd.f32 %v1600, %v1623
        %v1626 = vadd.f32 %v436, %v1625
        %v1627 = vld [vmem:[%s6] sm:$0x1]
        %v1629 = vperm.slane %v1627, 0
        %v1631 = vadd.f32 %v1626, %v1629
        %v1632 = vld [vmem:[%s7] sm:$0x1]
        %v1633 = vld [vmem:[%s8] sm:$0x1]
        %v1634 = vsel %vm439, %v1631, 0.0
        %1635 = vadd.xlane.f32.xlu0 %v1634
        %v1636 = vpop.xlane.xlu0 %1635
        %v1637 = vmul.f32 %v1636, %v449
        %v1638 = vsub.f32 %v1631, %v1637
        %v1639 = vmul.f32 %v1638, %v1638
        %v1640 = vsel %vm439, %v1639, 0.0
        %1641 = vadd.xlane.f32.xlu0 %v1640
        %v1642 = vpop.xlane.xlu0 %1641
        %v1643 = vmul.f32 %v1642, %v449
        %v1644 = vadd.f32 %v1643, 1e-05
        %v1645 = vrsqrt.pop %v1644
        %v1646 = vmul.f32 %v1645, %v1644
        %v1647 = vmul.f32 %v1646, %v1645
        %v1648 = vmul.f32 0.5, %v1647
        %v1649 = vsub.f32 1.5, %v1648
        %v1650 = vmul.f32 %v1645, %v1649
        %vm1651 = vweird.f32 %v1644
        %vm1652 = vweird.f32 %v1645
        %vm1653 = vmor %vm1651, %vm1652
        %v1654 = vsel %vm1653, %v1645, %v1650
        %v1655 = vmul.f32 %v1638, %v1654
        %v1657 = vperm.slane %v1632, 0
        %v1659 = vmul.f32 %v1655, %v1657
        %v1661 = vperm.slane %v1633, 0
        %v1663 = vadd.f32 %v1659, %v1661
        %v1664 = vld [vmem:[%s9] sm:$0xff]
        %v1665 = vld [vmem:[%s9 + $0x8] sm:$0xff]
        %v1666 = vld [vmem:[%s9 + $0x10] sm:$0xff]
        %v1667 = vld [vmem:[%s9 + $0x18] sm:$0xff]
        %v1668 = vld [vmem:[%s10] sm:$0x1]
        %v1670 = vperm.slane %v1668, 0
        %v1673 = vsel %vm439, %v1663, 0
        %1675 = vmatpush.msra.mxu0 0.0
        %1676 = vmatpush.msra.mxu0 0.0
        %1677 = vmatpush.msra.mxu0 0.0
        %1678 = vmatpush.msra.mxu0 0.0
        %1679 = vmatpush.msra.mxu0 0.0
        %1680 = vmatpush.msra.mxu0 0.0
        %1681 = vmatpush.msra.mxu0 0.0
        %1682 = vmatpush.msra.mxu0 0.0
        %1683 = vmatpush.msra.mxu0 0.0
        %1684 = vmatpush.msra.mxu0 0.0
        %1685 = vmatpush.msra.mxu0 0.0
        %1686 = vmatpush.msra.mxu0 0.0
        %1687 = vmatpush.msra.mxu0 %v1667
        %1688 = vmatpush.msra.mxu0 %v1666
        %1689 = vmatpush.msra.mxu0 %v1665
        %1690 = vmatpush.msra.mxu0 %v1664
        %1691 = vmatmul.f32.gmra.mxu0 %v1673
        %v1692 = vpop.f32.mrf.mxu0
        %v1693 = vadd.f32 %v1670, %v1692
        %1694 = vdwg.mxu0
        %v1695 = vmax.f32 %v1693, 0.0
        %v1696 = vld [vmem:[%s11] sm:$0xff]
        %v1697 = vld [vmem:[%s11 + $0x8] sm:$0xff]
        %v1698 = vld [vmem:[%s11 + $0x10] sm:$0xff]
        %v1699 = vld [vmem:[%s11 + $0x18] sm:$0xff]
        %v1700 = vld [vmem:[%s11 + $0x20] sm:$0xff]
        %v1701 = vld [vmem:[%s11 + $0x28] sm:$0xff]
        %v1702 = vld [vmem:[%s11 + $0x30] sm:$0xff]
        %v1703 = vld [vmem:[%s11 + $0x38] sm:$0xff]
        %v1704 = vld [vmem:[%s11 + $0x40] sm:$0xff]
        %v1705 = vld [vmem:[%s11 + $0x48] sm:$0xff]
        %v1706 = vld [vmem:[%s11 + $0x50] sm:$0xff]
        %v1707 = vld [vmem:[%s11 + $0x58] sm:$0xff]
        %v1708 = vld [vmem:[%s11 + $0x60] sm:$0xff]
        %v1709 = vld [vmem:[%s11 + $0x68] sm:$0xff]
        %v1710 = vld [vmem:[%s11 + $0x70] sm:$0xff]
        %v1711 = vld [vmem:[%s11 + $0x78] sm:$0xff]
        %1712 = vmatpush.msra.mxu0 %v1711
        %1713 = vmatpush.msra.mxu0 %v1710
        %1714 = vmatpush.msra.mxu0 %v1709
        %1715 = vmatpush.msra.mxu0 %v1708
        %1716 = vmatpush.msra.mxu0 %v1707
        %1717 = vmatpush.msra.mxu0 %v1706
        %1718 = vmatpush.msra.mxu0 %v1705
        %1719 = vmatpush.msra.mxu0 %v1704
        %1720 = vmatpush.msra.mxu0 %v1703
        %1721 = vmatpush.msra.mxu0 %v1702
        %1722 = vmatpush.msra.mxu0 %v1701
        %1723 = vmatpush.msra.mxu0 %v1700
        %1724 = vmatpush.msra.mxu0 %v1699
        %1725 = vmatpush.msra.mxu0 %v1698
        %1726 = vmatpush.msra.mxu0 %v1697
        %1727 = vmatpush.msra.mxu0 %v1696
        %1728 = vmatmul.f32.gmra.mxu0 %v1695
        %v1729 = vpop.f32.mrf.mxu0
        %v1730 = vadd.f32 0.0, %v1729
        %1731 = vdwg.mxu0
        %v1732 = vadd.f32 %v1631, %v1730
        %v1733 = vld [vmem:[%s12] sm:$0x1]
        %v1735 = vperm.slane %v1733, 0
        %v1737 = vadd.f32 %v1732, %v1735
        %1738 = vst.msk [vmem:[%s431] sm:$0xff] %vm439, %v1737
        %s1739 = sand.u32 %s313, 1
        %s1740 = scalar_lea.sflag [#allocation3], %s1739
        %s1741 = sand.u32 %s313, 1
        %s1742 = smul.addr %s1741, 8
        %s1743 = scalar_lea.vmem [#allocation2], %s1742
        // Predicated region
        $region73: #{tpu_custom_call.1} parent=71 // pred_check
          %p1744 = pneg %p323
        $region74: #{tpu_custom_call.1} parent=71 // pred_check_branch
          %1746 = sbr.rel (%p1744) target = $region76
        $region75: #{tpu_custom_call.1} parent=71 // pred_region
          %1748 = vsyncadd %s1740, 0
          %s1749 = smul.addr %s27, 8
          %s1750 = scalar_lea.hbm %s13, %s1749
          %s1752 = sshll.u32 %s1743, 4
          %s1753 = int_to_ptr.vmem [resolvable:$true] %s1752
          %s1754 = sshll.u32 %s1750, 4
          %s1755 = int_to_ptr.hbm [resolvable:$true] %s1754
          %1757 = dma.vmem_to_hbm [thread:$0]  %s1753, 128, %s1755, %s1740
        $region76: #{tpu_custom_call.1} parent=71 // pred_fallthru
          _
      $region72: #{tpu_custom_call.1} parent=5 // pred_fallthru
        _
      %p1758 = scmp.le.s32.totalorder 2, %s22
      // Predicated region
      $region77: #{tpu_custom_call.1} parent=5 // pred_check
        %p1759 = pneg %p1758
      $region78: #{tpu_custom_call.1} parent=5 // pred_check_branch
        %1761 = sbr.rel (%p1759) target = $region80
      $region79: #{tpu_custom_call.1} parent=5 // pred_region
        %s1762 = ssub.s32 %s22, 2
        // Predicated region
        $region81: #{tpu_custom_call.1} parent=79 // pred_check
          %p1763 = pneg %p329
        $region82: #{tpu_custom_call.1} parent=79 // pred_check_branch
          %1765 = sbr.rel (%p1763) target = $region84
        $region83: #{tpu_custom_call.1} parent=79 // pred_region
          %s1766 = sand.u32 %s314, 1
          %s1767 = scalar_lea.sflag [#allocation3], %s1766
          %s1768 = sand.u32 %s314, 1
          %s1769 = smul.addr %s1768, 8
          %s1770 = scalar_lea.vmem [#allocation2], %s1769
          %1772 = dma.done %s1767, 128
        $region84: #{tpu_custom_call.1} parent=79 // pred_fallthru
          _
      $region80: #{tpu_custom_call.1} parent=5 // pred_fallthru
        _
    $region6: #{tpu_custom_call.1} parent=1 // loop_footer
      %s26 = sadd.s32 1, %s22
    $region7: #{tpu_custom_call.1} parent=1 // loop_footer_branch
      %21 = sbr.rel target = $region3
    $region8: #{tpu_custom_call.1} parent=1 // loop_exit
      _
    %1773 = vsyncpa [#allocation3], 1
    %s1774 = scalar_lea.sflag [#allocation3], 1
    %1775 = vsyncpa %s1774, 1

</llo_original>
